<compile_context>
chip_gen: v6e
topology: v6e:2x2x1
jax: 0.10.0
libtpu: 0.0.40
codegen_flags: <defaults>
</compile_context>

<pallas_src>
import numpy as np
import jax
import jax.numpy as jnp
from jax.experimental import pallas as pl
from jax.experimental.pallas import tpu as pltpu

# Problem sizes (out_channels == in_channels is required by the residual add).
N, C, H, W = 2, 8, 16, 16
PIECES = 4
PS = C // PIECES              # channels per piece
R = N * C                     # sublane axis of activations (16)
L = H * W                     # lane axis (256, multiple of 128)
NP = N * PS                   # rows of a per-piece activation (4)
KP = 8                        # padded rows per prev tap (8-sublane aligned)
EPS = 1e-5                    # BatchNorm2d default eps
SLOPE = 0.1                   # leaky_relu negative_slope

assert H & (H - 1) == 0 and W & (W - 1) == 0   # masks below use shifts/ands
LOG2_W = W.bit_length() - 1


def _leaky(v):
    return jnp.where(v > 0, v, SLOPE * v)


def res2pcs_kernel(x_ref, w1_ref, g1_ref, b1_ref,
                   wbig_ref, wprev_ref, g2_ref, b2_ref,
                   w3_ref, g3_ref, b3_ref, o_ref):
    x = x_ref[...]                                       # (R, L) f32, rows n*C+c

    def bn(v, gamma, beta, activate=True):
        # Training-mode BatchNorm2d over (N, H, W).  Rows of v are ordered
        # [n=0 channels ; n=1 channels].  Sum and sum-of-squares fused into a
        # single cross-lane reduce of a stacked [v ; v*v].
        ch = v.shape[0] // N
        stats = jnp.sum(jnp.concatenate([v, v * v], axis=0),
                        axis=1, keepdims=True)           # (2*N*ch, 1)
        s, ss = stats[:N * ch], stats[N * ch:]
        sum_c = s[:ch] + s[ch:]                          # fold the batch rows
        sumsq_c = ss[:ch] + ss[ch:]
        inv_n = 1.0 / (N * v.shape[1])
        mean = sum_c * inv_n
        var = sumsq_c * inv_n - mean * mean
        scale = gamma * jax.lax.rsqrt(var + EPS)         # (ch, 1)
        shift = beta - mean * scale
        out = (v * jnp.concatenate([scale] * N, axis=0)
               + jnp.concatenate([shift] * N, axis=0))
        return _leaky(out) if activate else out

    # ---- boundary masks for the 9 conv taps (computed once) ----
    f32 = jnp.float32
    idx = jax.lax.broadcasted_iota(jnp.int32, (1, L), 1)
    wi = idx & (W - 1)                       # w coordinate of each lane
    hi = (idx >> LOG2_W) & (H - 1)           # h coordinate of each lane
    h_ok = {-1: (hi >= 1).astype(f32), 1: (hi <= H - 2).astype(f32)}
    w_ok = {-1: (wi >= 1).astype(f32), 1: (wi <= W - 2).astype(f32)}
    taps = []                                # (lane shift, float mask or None)
    for dh in (-1, 0, 1):
        for dw in (-1, 0, 1):
            # shifted[l] = a[l + dh*W + dw]  <=>  roll by -(dh*W + dw)
            shift = (-(dh * W + dw)) % L
            if dh == 0 and dw == 0:
                mask = None
            elif dh == 0:
                mask = w_ok[dw]
            elif dw == 0:
                mask = h_ok[dh]
            else:
                mask = h_ok[dh] * w_ok[dw]
            taps.append((shift, mask))

    def im2col(a):
        cols = []
        for shift, mask in taps:
            t = a if shift == 0 else pltpu.roll(a, shift, axis=1)
            if mask is not None:
                t = t * mask                 # zero the conv padding region
            cols.append(t)
        return jnp.concatenate(cols, axis=0) # all segments 8-row aligned

    # ---- conv1: block-diag 1x1 (one MXU matmul) + BN + leaky ----
    h = jnp.dot(w1_ref[...], x.astype(jnp.bfloat16),
                preferred_element_type=jnp.float32)      # (R, L) f32
    h = bn(h, g1_ref[...], b1_ref[...])

    # ---- hoisted: full-h im2col + all cur-half (and piece0-prev) contribs ----
    col_h = im2col(h)                                    # (9*R, L)
    pre = jnp.dot(wbig_ref[...], col_h.astype(jnp.bfloat16),
                  preferred_element_type=jnp.float32)    # (R, L), piece-major rows

    # ---- serial res2 chain: only the prev-half work stays on the chain ----
    zpad = jnp.zeros((KP - NP, L), jnp.float32)
    outs = []
    prev = None
    for i in range(PIECES):
        z = pre[i * NP:(i + 1) * NP, :]                  # (NP, L)
        if i > 0:
            col_p = im2col(jnp.concatenate([prev, zpad], axis=0))   # (9*KP, L)
            z = z + jnp.dot(wprev_ref[i - 1], col_p.astype(jnp.bfloat16),
                            preferred_element_type=jnp.float32)
        y = bn(z, g2_ref[i], b2_ref[i])                  # (NP, L)
        outs.append(y)
        prev = y

    # ---- conv3 (input permutation folded into weight) + BN, residual, leaky ----
    cat = jnp.concatenate(outs, axis=0)                  # (R, L), piece-major rows
    o = jnp.dot(w3_ref[...], cat.astype(jnp.bfloat16),
                preferred_element_type=jnp.float32)      # (R, L), standard rows
    o = bn(o, g3_ref[...], b3_ref[...], activate=False)
    o_ref[...] = _leaky(o + x).astype(o_ref.dtype)


def _full_spec(shape):
    nd = len(shape)
    return pl.BlockSpec(shape, lambda i, nd=nd: (0,) * nd)


@jax.jit
def res2pcs_forward(x_nchw, kparams):
    # NCHW -> (N*C, H*W) is a FREE reshape (no transpose / HBM copy); the
    # batch dim is handled inside the kernel via block-diagonal weights.
    x2d = x_nchw.reshape(R, L).astype(jnp.float32)
    args = (x2d,) + tuple(kparams)
    out2d = pl.pallas_call(
        res2pcs_kernel,
        out_shape=jax.ShapeDtypeStruct((R, L), jnp.float32),
        grid_spec=pltpu.PrefetchScalarGridSpec(
            num_scalar_prefetch=0,
            grid=(1,),   # toy size: one step.  When scaling NHW up, tile the
                         # lane axis with a leading "parallel" grid axis (v7x).
            in_specs=[_full_spec(a.shape) for a in args],
            out_specs=_full_spec((R, L)),
        ),
        compiler_params=pltpu.CompilerParams(dimension_semantics=("arbitrary",)),
    )(*args)
    return out2d.reshape(N, C, H, W).astype(x_nchw.dtype)


def init_params(key):
    """Deterministic synthetic weights in PyTorch layout (kaiming fan_out-ish)."""
    ks = jax.random.split(key, 2 + PIECES)
    gain = (2.0 / (1.0 + 0.01 ** 2)) ** 0.5
    w1 = jax.random.normal(ks[0], (C, C, 1, 1), jnp.float32) * (gain / C ** 0.5)
    w2 = jnp.stack([jax.random.normal(ks[1 + i], (PS, 2 * PS, 3, 3), jnp.float32)
                    * (gain / (PS * 9) ** 0.5) for i in range(PIECES)])
    w3 = jax.random.normal(ks[1 + PIECES], (C, C, 1, 1), jnp.float32) * (gain / C ** 0.5)
    return dict(
        w1=w1, w2=w2, w3=w3,
        g1=jnp.ones((C,), jnp.float32), b1=jnp.zeros((C,), jnp.float32),
        g2=jnp.ones((PIECES, PS), jnp.float32), b2=jnp.zeros((PIECES, PS), jnp.float32),
        g3=jnp.ones((C,), jnp.float32), b3=jnp.zeros((C,), jnp.float32))


def pack_params(p):
    """PyTorch layouts -> kernel layouts: bf16 matmul weights, batch folded
    into block-diagonal 1x1 weights, and the 3x3 weights split into one
    hoisted cur(+piece0-prev) block plus per-piece prev blocks."""
    w1 = np.asarray(p["w1"][:, :, 0, 0], np.float32)     # (C, C)
    w2 = np.asarray(p["w2"], np.float32)                 # (PIECES, PS, 2*PS, 3, 3)
    w3 = np.asarray(p["w3"][:, :, 0, 0], np.float32)     # (C, C)

    # conv1: block-diagonal over batch; activation rows are n*C + c.
    w1_big = np.zeros((R, R), np.float32)
    for n in range(N):
        w1_big[n * C:(n + 1) * C, n * C:(n + 1) * C] = w1

    # Hoisted 3x3 weight: output rows in piece-major order q = i*NP + n*PS + p;
    # columns index the full-h im2col: col = t*R + n*C + c_global.
    w_big = np.zeros((R, 9 * R), np.float32)
    # Per-piece prev weights (pieces 1..): columns index the 8-row padded prev
    # im2col: col = t*KP + n*PS + c (pad rows NP..KP-1 keep zero weights).
    w_prev = np.zeros((PIECES - 1, NP, 9 * KP), np.float32)
    for i in range(PIECES):
        for n in range(N):
            for pch in range(PS):
                q = i * NP + n * PS + pch
                for kh in range(3):
                    for kw in range(3):
                        t = kh * 3 + kw
                        for c in range(PS):
                            # cur half: input channels i*PS + c of h
                            w_big[q, t * R + n * C + i * PS + c] = w2[i, pch, c, kh, kw]
                            if i == 0:
                                # piece 0's prev = original last piece of h
                                w_big[q, t * R + n * C + (PIECES - 1) * PS + c] = \
                                    w2[0, pch, PS + c, kh, kw]
                            else:
                                w_prev[i - 1, n * PS + pch, t * KP + n * PS + c] = \
                                    w2[i, pch, PS + c, kh, kw]

    # conv3: block-diagonal over batch, with the piece-major row permutation of
    # its input folded into the columns.
    w3_big = np.zeros((R, R), np.float32)
    for n in range(N):
        for co in range(C):
            for i in range(PIECES):
                for pch in range(PS):
                    w3_big[n * C + co, i * NP + n * PS + pch] = w3[co, i * PS + pch]

    bf = jnp.bfloat16
    return (jnp.asarray(w1_big, bf),
            p["g1"].reshape(C, 1), p["b1"].reshape(C, 1),
            jnp.asarray(w_big, bf),
            jnp.asarray(w_prev, bf),
            p["g2"].reshape(PIECES, PS, 1), p["b2"].reshape(PIECES, PS, 1),
            jnp.asarray(w3_big, bf),
            p["g3"].reshape(C, 1), p["b3"].reshape(C, 1))


# ------------------------- pure-JAX reference -------------------------------
def _conv_ref(x, w, pad):
    return jax.lax.conv_general_dilated(
        x, w, window_strides=(1, 1), padding=[(pad, pad), (pad, pad)],
        dimension_numbers=("NCHW", "OIHW", "NCHW"),
        precision=jax.lax.Precision.HIGHEST)


def _bn_ref(x, gamma, beta):
    mean = jnp.mean(x, axis=(0, 2, 3), keepdims=True)
    var = jnp.mean(jnp.square(x - mean), axis=(0, 2, 3), keepdims=True)
    return ((x - mean) * jax.lax.rsqrt(var + EPS)
            * gamma.reshape(1, -1, 1, 1) + beta.reshape(1, -1, 1, 1))


def res2pcs_reference(x, p):
    """Pure-JAX replica of the PyTorch forward (mini_shortcut=False)."""
    identity = x
    h = _leaky(_bn_ref(_conv_ref(x, p["w1"], 0), p["g1"], p["b1"]))
    pieces = [h[:, i * PS:(i + 1) * PS] for i in range(PIECES)]
    prev = pieces[-1]                        # original last piece (as in torch)
    outs = []
    for i in range(PIECES):
        cat = jnp.concatenate([pieces[i], prev], axis=1)
        y = _leaky(_bn_ref(_conv_ref(cat, p["w2"][i], 1), p["g2"][i], p["b2"][i]))
        outs.append(y)
        prev = y
    o = _bn_ref(_conv_ref(jnp.concatenate(outs, axis=1), p["w3"], 0), p["g3"], p["b3"])
    return _leaky(o + identity)


if __name__ == "__main__":
    key = jax.random.PRNGKey(0)
    kx, kp = jax.random.split(key)
    x = jax.random.normal(kx, (N, C, H, W), jnp.float32)       # NCHW, like PyTorch
    pt_params = init_params(kp)
    kparams = pack_params(pt_params)

    out = res2pcs_forward(x, kparams)
    jax.block_until_ready(out)
    assert out.shape == (N, C, H, W) and out.dtype == jnp.float32

    # Correctness vs the f32/HIGHEST pure-JAX replica.  Error is dominated by
    # the intentional bf16 operand rounding on the MXU; structural/layout bugs
    # would show up as O(1) differences.
    ref = res2pcs_reference(x, pt_params)
    max_err = float(jnp.max(jnp.abs(out - ref)))
    mean_err = float(jnp.mean(jnp.abs(out - ref)))
    assert max_err < 2e-1 and mean_err < 2e-2, (max_err, mean_err)

    # TODO(synk): mini_shortcut=True branch not implemented (upstream code
    # applies F.leaky_relu to a Python list and is broken); BatchNorm
    # running-stat updates (training side effect) are not reproduced.
    print("KERNEL_OK")
</pallas_src>

<mosaic_0001>
module attributes {stable_mosaic.version = 11 : i64} {
  func.func @res2pcs_kernel(%arg0: i32, %arg1: memref<16x256xf32, #tpu.memory_space<vmem>>, %arg2: memref<16x16xbf16, #tpu.memory_space<vmem>>, %arg3: memref<8x1xf32, #tpu.memory_space<vmem>>, %arg4: memref<8x1xf32, #tpu.memory_space<vmem>>, %arg5: memref<16x144xbf16, #tpu.memory_space<vmem>>, %arg6: memref<3x4x72xbf16, #tpu.memory_space<vmem>>, %arg7: memref<4x2x1xf32, #tpu.memory_space<vmem>>, %arg8: memref<4x2x1xf32, #tpu.memory_space<vmem>>, %arg9: memref<16x16xbf16, #tpu.memory_space<vmem>>, %arg10: memref<8x1xf32, #tpu.memory_space<vmem>>, %arg11: memref<8x1xf32, #tpu.memory_space<vmem>>, %arg12: memref<16x256xf32, #tpu.memory_space<vmem>>) attributes {dimension_semantics = [#tpu.dimension_semantics<arbitrary>], iteration_bounds = array<i64: 1>, scalar_prefetch = 0 : i64, scratch_operands = 0 : i64, tpu.core_type = #tpu.core_type<tc>, window_params = [{pipeline_mode = #tpu.pipeline_mode<synchronous>, transform_indices = @transform_0, window_bounds = array<i64: 16, 256>}, {pipeline_mode = #tpu.pipeline_mode<synchronous>, transform_indices = @transform_1, window_bounds = array<i64: 16, 16>}, {pipeline_mode = #tpu.pipeline_mode<synchronous>, transform_indices = @transform_2, window_bounds = array<i64: 8, 1>}, {pipeline_mode = #tpu.pipeline_mode<synchronous>, transform_indices = @transform_3, window_bounds = array<i64: 8, 1>}, {pipeline_mode = #tpu.pipeline_mode<synchronous>, transform_indices = @transform_4, window_bounds = array<i64: 16, 144>}, {pipeline_mode = #tpu.pipeline_mode<synchronous>, transform_indices = @transform_5, window_bounds = array<i64: 3, 4, 72>}, {pipeline_mode = #tpu.pipeline_mode<synchronous>, transform_indices = @transform_6, window_bounds = array<i64: 4, 2, 1>}, {pipeline_mode = #tpu.pipeline_mode<synchronous>, transform_indices = @transform_7, window_bounds = array<i64: 4, 2, 1>}, {pipeline_mode = #tpu.pipeline_mode<synchronous>, transform_indices = @transform_8, window_bounds = array<i64: 16, 16>}, {pipeline_mode = #tpu.pipeline_mode<synchronous>, transform_indices = @transform_9, window_bounds = array<i64: 8, 1>}, {pipeline_mode = #tpu.pipeline_mode<synchronous>, transform_indices = @transform_10, window_bounds = array<i64: 8, 1>}, {pipeline_mode = #tpu.pipeline_mode<synchronous>, transform_indices = @transform_11, window_bounds = array<i64: 16, 256>}]} {
    %c0 = arith.constant 0 : index
    %c0_0 = arith.constant 0 : index
    %0 = vector.load %arg1[%c0, %c0_0] : memref<16x256xf32, #tpu.memory_space<vmem>>, vector<16x256xf32>
    %1 = tpu.iota {dimensions = array<i32: 1>} : vector<1x256xi32>
    %c15_i32 = arith.constant 15 : i32
    %2 = vector.broadcast %c15_i32 : i32 to vector<1x256xi32>
    %3 = arith.andi %1, %2 : vector<1x256xi32>
    %c4_i32 = arith.constant 4 : i32
    %4 = vector.broadcast %c4_i32 : i32 to vector<1x256xi32>
    %5 = arith.shrsi %1, %4 : vector<1x256xi32>
    %c15_i32_1 = arith.constant 15 : i32
    %6 = vector.broadcast %c15_i32_1 : i32 to vector<1x256xi32>
    %7 = arith.andi %5, %6 : vector<1x256xi32>
    %c1_i32 = arith.constant 1 : i32
    %8 = vector.broadcast %c1_i32 : i32 to vector<1x256xi32>
    %9 = arith.cmpi sge, %7, %8 : vector<1x256xi32>
    %10 = arith.extui %9 : vector<1x256xi1> to vector<1x256xi32>
    %11 = arith.sitofp %10 : vector<1x256xi32> to vector<1x256xf32>
    %c14_i32 = arith.constant 14 : i32
    %12 = vector.broadcast %c14_i32 : i32 to vector<1x256xi32>
    %13 = arith.cmpi sle, %7, %12 : vector<1x256xi32>
    %14 = arith.extui %13 : vector<1x256xi1> to vector<1x256xi32>
    %15 = arith.sitofp %14 : vector<1x256xi32> to vector<1x256xf32>
    %c1_i32_2 = arith.constant 1 : i32
    %16 = vector.broadcast %c1_i32_2 : i32 to vector<1x256xi32>
    %17 = arith.cmpi sge, %3, %16 : vector<1x256xi32>
    %18 = arith.extui %17 : vector<1x256xi1> to vector<1x256xi32>
    %19 = arith.sitofp %18 : vector<1x256xi32> to vector<1x256xf32>
    %c14_i32_3 = arith.constant 14 : i32
    %20 = vector.broadcast %c14_i32_3 : i32 to vector<1x256xi32>
    %21 = arith.cmpi sle, %3, %20 : vector<1x256xi32>
    %22 = arith.extui %21 : vector<1x256xi1> to vector<1x256xi32>
    %23 = arith.sitofp %22 : vector<1x256xi32> to vector<1x256xf32>
    %24 = arith.mulf %11, %19 : vector<1x256xf32>
    %25 = arith.mulf %11, %23 : vector<1x256xf32>
    %26 = arith.mulf %15, %19 : vector<1x256xf32>
    %27 = arith.mulf %15, %23 : vector<1x256xf32>
    %c0_4 = arith.constant 0 : index
    %c0_5 = arith.constant 0 : index
    %28 = vector.load %arg2[%c0_4, %c0_5] : memref<16x16xbf16, #tpu.memory_space<vmem>>, vector<16x16xbf16>
    %29 = arith.truncf %0 : vector<16x256xf32> to vector<16x256xbf16>
    %cst = arith.constant dense<0.000000e+00> : vector<16x256xf32>
    %30 = tpu.matmul %28, %29, %cst {dimension_numbers = #tpu.dot_dimension_numbers<[1], [0], [0], [1], [0, 0, 1, 1], [], []>} : vector<16x16xbf16>, vector<16x256xbf16>, vector<16x256xf32> -> vector<16x256xf32>
    %c0_6 = arith.constant 0 : index
    %c0_7 = arith.constant 0 : index
    %31 = vector.load %arg3[%c0_6, %c0_7] : memref<8x1xf32, #tpu.memory_space<vmem>>, vector<8x1xf32>
    %c0_8 = arith.constant 0 : index
    %c0_9 = arith.constant 0 : index
    %32 = vector.load %arg4[%c0_8, %c0_9] : memref<8x1xf32, #tpu.memory_space<vmem>>, vector<8x1xf32>
    %33 = arith.mulf %30, %30 : vector<16x256xf32>
    %34 = tpu.concatenate %30, %33 in 0 : vector<16x256xf32>, vector<16x256xf32> -> vector<32x256xf32>
    %cst_10 = arith.constant dense<0.000000e+00> : vector<32xf32>
    %35 = vector.multi_reduction <add>, %34, %cst_10 [1] : vector<32x256xf32> to vector<32xf32>
    %36 = vector.shape_cast %35 : vector<32xf32> to vector<32x1xf32>
    %37 = vector.extract_strided_slice %36 {offsets = [0, 0], sizes = [16, 1], strides = [1, 1]} : vector<32x1xf32> to vector<16x1xf32>
    %38 = vector.extract_strided_slice %36 {offsets = [16, 0], sizes = [16, 1], strides = [1, 1]} : vector<32x1xf32> to vector<16x1xf32>
    %39 = vector.extract_strided_slice %37 {offsets = [0, 0], sizes = [8, 1], strides = [1, 1]} : vector<16x1xf32> to vector<8x1xf32>
    %40 = vector.extract_strided_slice %37 {offsets = [8, 0], sizes = [8, 1], strides = [1, 1]} : vector<16x1xf32> to vector<8x1xf32>
    %41 = arith.addf %39, %40 : vector<8x1xf32>
    %42 = vector.extract_strided_slice %38 {offsets = [0, 0], sizes = [8, 1], strides = [1, 1]} : vector<16x1xf32> to vector<8x1xf32>
    %43 = vector.extract_strided_slice %38 {offsets = [8, 0], sizes = [8, 1], strides = [1, 1]} : vector<16x1xf32> to vector<8x1xf32>
    %44 = arith.addf %42, %43 : vector<8x1xf32>
    %cst_11 = arith.constant 0.001953125 : f32
    %45 = vector.broadcast %cst_11 : f32 to vector<8x1xf32>
    %46 = arith.mulf %41, %45 : vector<8x1xf32>
    %cst_12 = arith.constant 0.001953125 : f32
    %47 = vector.broadcast %cst_12 : f32 to vector<8x1xf32>
    %48 = arith.mulf %44, %47 : vector<8x1xf32>
    %49 = arith.mulf %46, %46 : vector<8x1xf32>
    %50 = arith.subf %48, %49 : vector<8x1xf32>
    %cst_13 = arith.constant 9.99999974E-6 : f32
    %51 = vector.broadcast %cst_13 : f32 to vector<8x1xf32>
    %52 = arith.addf %50, %51 : vector<8x1xf32>
    %53 = math.rsqrt %52 : vector<8x1xf32>
    %54 = arith.mulf %31, %53 : vector<8x1xf32>
    %55 = arith.mulf %46, %54 : vector<8x1xf32>
    %56 = arith.subf %32, %55 : vector<8x1xf32>
    %57 = tpu.concatenate %54, %54 in 0 : vector<8x1xf32>, vector<8x1xf32> -> vector<16x1xf32>
    %58 = vector.broadcast %57 : vector<16x1xf32> to vector<16x256xf32>
    %59 = arith.mulf %30, %58 : vector<16x256xf32>
    %60 = tpu.concatenate %56, %56 in 0 : vector<8x1xf32>, vector<8x1xf32> -> vector<16x1xf32>
    %61 = vector.broadcast %60 : vector<16x1xf32> to vector<16x256xf32>
    %62 = arith.addf %59, %61 : vector<16x256xf32>
    %cst_14 = arith.constant 0.000000e+00 : f32
    %63 = vector.broadcast %cst_14 : f32 to vector<16x256xf32>
    %64 = arith.cmpf ogt, %62, %63 : vector<16x256xf32>
    %cst_15 = arith.constant 1.000000e-01 : f32
    %65 = vector.broadcast %cst_15 : f32 to vector<16x256xf32>
    %66 = arith.mulf %65, %62 : vector<16x256xf32>
    %67 = arith.select %64, %62, %66 : vector<16x256xi1>, vector<16x256xf32>
    %c17_i32 = arith.constant 17 : i32
    %68 = tpu.dynamic_rotate %67 by %c17_i32 dim 1 : vector<16x256xf32>, i32 -> vector<16x256xf32>
    %69 = vector.broadcast %24 : vector<1x256xf32> to vector<16x256xf32>
    %70 = arith.mulf %68, %69 : vector<16x256xf32>
    %c16_i32 = arith.constant 16 : i32
    %71 = tpu.dynamic_rotate %67 by %c16_i32 dim 1 : vector<16x256xf32>, i32 -> vector<16x256xf32>
    %72 = vector.broadcast %11 : vector<1x256xf32> to vector<16x256xf32>
    %73 = arith.mulf %71, %72 : vector<16x256xf32>
    %c15_i32_16 = arith.constant 15 : i32
    %74 = tpu.dynamic_rotate %67 by %c15_i32_16 dim 1 : vector<16x256xf32>, i32 -> vector<16x256xf32>
    %75 = vector.broadcast %25 : vector<1x256xf32> to vector<16x256xf32>
    %76 = arith.mulf %74, %75 : vector<16x256xf32>
    %c1_i32_17 = arith.constant 1 : i32
    %77 = tpu.dynamic_rotate %67 by %c1_i32_17 dim 1 : vector<16x256xf32>, i32 -> vector<16x256xf32>
    %78 = vector.broadcast %19 : vector<1x256xf32> to vector<16x256xf32>
    %79 = arith.mulf %77, %78 : vector<16x256xf32>
    %c255_i32 = arith.constant 255 : i32
    %80 = tpu.dynamic_rotate %67 by %c255_i32 dim 1 : vector<16x256xf32>, i32 -> vector<16x256xf32>
    %81 = vector.broadcast %23 : vector<1x256xf32> to vector<16x256xf32>
    %82 = arith.mulf %80, %81 : vector<16x256xf32>
    %c241_i32 = arith.constant 241 : i32
    %83 = tpu.dynamic_rotate %67 by %c241_i32 dim 1 : vector<16x256xf32>, i32 -> vector<16x256xf32>
    %84 = vector.broadcast %26 : vector<1x256xf32> to vector<16x256xf32>
    %85 = arith.mulf %83, %84 : vector<16x256xf32>
    %c240_i32 = arith.constant 240 : i32
    %86 = tpu.dynamic_rotate %67 by %c240_i32 dim 1 : vector<16x256xf32>, i32 -> vector<16x256xf32>
    %87 = vector.broadcast %15 : vector<1x256xf32> to vector<16x256xf32>
    %88 = arith.mulf %86, %87 : vector<16x256xf32>
    %c239_i32 = arith.constant 239 : i32
    %89 = tpu.dynamic_rotate %67 by %c239_i32 dim 1 : vector<16x256xf32>, i32 -> vector<16x256xf32>
    %90 = vector.broadcast %27 : vector<1x256xf32> to vector<16x256xf32>
    %91 = arith.mulf %89, %90 : vector<16x256xf32>
    %92 = tpu.concatenate %70, %73, %76, %79, %67, %82, %85, %88, %91 in 0 : vector<16x256xf32>, vector<16x256xf32>, vector<16x256xf32>, vector<16x256xf32>, vector<16x256xf32>, vector<16x256xf32>, vector<16x256xf32>, vector<16x256xf32>, vector<16x256xf32> -> vector<144x256xf32>
    %c0_18 = arith.constant 0 : index
    %c0_19 = arith.constant 0 : index
    %93 = vector.load %arg5[%c0_18, %c0_19] : memref<16x144xbf16, #tpu.memory_space<vmem>>, vector<16x144xbf16>
    %94 = arith.truncf %92 : vector<144x256xf32> to vector<144x256xbf16>
    %cst_20 = arith.constant dense<0.000000e+00> : vector<16x256xf32>
    %95 = tpu.matmul %93, %94, %cst_20 {dimension_numbers = #tpu.dot_dimension_numbers<[1], [0], [0], [1], [0, 0, 1, 1], [], []>} : vector<16x144xbf16>, vector<144x256xbf16>, vector<16x256xf32> -> vector<16x256xf32>
    %cst_21 = arith.constant 0.000000e+00 : f32
    %96 = vector.broadcast %cst_21 : f32 to vector<4x256xf32>
    %97 = vector.extract_strided_slice %95 {offsets = [0, 0], sizes = [4, 256], strides = [1, 1]} : vector<16x256xf32> to vector<4x256xf32>
    %c0_22 = arith.constant 0 : index
    %c0_23 = arith.constant 0 : index
    %c0_24 = arith.constant 0 : index
    %98 = vector.load %arg7[%c0_22, %c0_23, %c0_24] : memref<4x2x1xf32, #tpu.memory_space<vmem>>, vector<1x2x1xf32>
    %99 = vector.shape_cast %98 : vector<1x2x1xf32> to vector<2x1xf32>
    %c0_25 = arith.constant 0 : index
    %c0_26 = arith.constant 0 : index
    %c0_27 = arith.constant 0 : index
    %100 = vector.load %arg8[%c0_25, %c0_26, %c0_27] : memref<4x2x1xf32, #tpu.memory_space<vmem>>, vector<1x2x1xf32>
    %101 = vector.shape_cast %100 : vector<1x2x1xf32> to vector<2x1xf32>
    %102 = arith.mulf %97, %97 : vector<4x256xf32>
    %103 = tpu.concatenate %97, %102 in 0 : vector<4x256xf32>, vector<4x256xf32> -> vector<8x256xf32>
    %cst_28 = arith.constant dense<0.000000e+00> : vector<8xf32>
    %104 = vector.multi_reduction <add>, %103, %cst_28 [1] : vector<8x256xf32> to vector<8xf32>
    %105 = vector.shape_cast %104 : vector<8xf32> to vector<8x1xf32>
    %106 = vector.extract_strided_slice %105 {offsets = [0, 0], sizes = [4, 1], strides = [1, 1]} : vector<8x1xf32> to vector<4x1xf32>
    %107 = vector.extract_strided_slice %105 {offsets = [4, 0], sizes = [4, 1], strides = [1, 1]} : vector<8x1xf32> to vector<4x1xf32>
    %108 = vector.extract_strided_slice %106 {offsets = [0, 0], sizes = [2, 1], strides = [1, 1]} : vector<4x1xf32> to vector<2x1xf32>
    %109 = vector.extract_strided_slice %106 {offsets = [2, 0], sizes = [2, 1], strides = [1, 1]} : vector<4x1xf32> to vector<2x1xf32>
    %110 = arith.addf %108, %109 : vector<2x1xf32>
    %111 = vector.extract_strided_slice %107 {offsets = [0, 0], sizes = [2, 1], strides = [1, 1]} : vector<4x1xf32> to vector<2x1xf32>
    %112 = vector.extract_strided_slice %107 {offsets = [2, 0], sizes = [2, 1], strides = [1, 1]} : vector<4x1xf32> to vector<2x1xf32>
    %113 = arith.addf %111, %112 : vector<2x1xf32>
    %cst_29 = arith.constant 0.001953125 : f32
    %114 = vector.broadcast %cst_29 : f32 to vector<2x1xf32>
    %115 = arith.mulf %110, %114 : vector<2x1xf32>
    %cst_30 = arith.constant 0.001953125 : f32
    %116 = vector.broadcast %cst_30 : f32 to vector<2x1xf32>
    %117 = arith.mulf %113, %116 : vector<2x1xf32>
    %118 = arith.mulf %115, %115 : vector<2x1xf32>
    %119 = arith.subf %117, %118 : vector<2x1xf32>
    %cst_31 = arith.constant 9.99999974E-6 : f32
    %120 = vector.broadcast %cst_31 : f32 to vector<2x1xf32>
    %121 = arith.addf %119, %120 : vector<2x1xf32>
    %122 = math.rsqrt %121 : vector<2x1xf32>
    %123 = arith.mulf %99, %122 : vector<2x1xf32>
    %124 = arith.mulf %115, %123 : vector<2x1xf32>
    %125 = arith.subf %101, %124 : vector<2x1xf32>
    %126 = tpu.concatenate %123, %123 in 0 : vector<2x1xf32>, vector<2x1xf32> -> vector<4x1xf32>
    %127 = vector.broadcast %126 : vector<4x1xf32> to vector<4x256xf32>
    %128 = arith.mulf %97, %127 : vector<4x256xf32>
    %129 = tpu.concatenate %125, %125 in 0 : vector<2x1xf32>, vector<2x1xf32> -> vector<4x1xf32>
    %130 = vector.broadcast %129 : vector<4x1xf32> to vector<4x256xf32>
    %131 = arith.addf %128, %130 : vector<4x256xf32>
    %cst_32 = arith.constant 0.000000e+00 : f32
    %132 = vector.broadcast %cst_32 : f32 to vector<4x256xf32>
    %133 = arith.cmpf ogt, %131, %132 : vector<4x256xf32>
    %cst_33 = arith.constant 1.000000e-01 : f32
    %134 = vector.broadcast %cst_33 : f32 to vector<4x256xf32>
    %135 = arith.mulf %134, %131 : vector<4x256xf32>
    %136 = arith.select %133, %131, %135 : vector<4x256xi1>, vector<4x256xf32>
    %137 = vector.extract_strided_slice %95 {offsets = [4, 0], sizes = [4, 256], strides = [1, 1]} : vector<16x256xf32> to vector<4x256xf32>
    %138 = tpu.concatenate %136, %96 in 0 : vector<4x256xf32>, vector<4x256xf32> -> vector<8x256xf32>
    %c17_i32_34 = arith.constant 17 : i32
    %139 = tpu.dynamic_rotate %138 by %c17_i32_34 dim 1 : vector<8x256xf32>, i32 -> vector<8x256xf32>
    %140 = vector.broadcast %24 : vector<1x256xf32> to vector<8x256xf32>
    %141 = arith.mulf %139, %140 : vector<8x256xf32>
    %c16_i32_35 = arith.constant 16 : i32
    %142 = tpu.dynamic_rotate %138 by %c16_i32_35 dim 1 : vector<8x256xf32>, i32 -> vector<8x256xf32>
    %143 = vector.broadcast %11 : vector<1x256xf32> to vector<8x256xf32>
    %144 = arith.mulf %142, %143 : vector<8x256xf32>
    %c15_i32_36 = arith.constant 15 : i32
    %145 = tpu.dynamic_rotate %138 by %c15_i32_36 dim 1 : vector<8x256xf32>, i32 -> vector<8x256xf32>
    %146 = vector.broadcast %25 : vector<1x256xf32> to vector<8x256xf32>
    %147 = arith.mulf %145, %146 : vector<8x256xf32>
    %c1_i32_37 = arith.constant 1 : i32
    %148 = tpu.dynamic_rotate %138 by %c1_i32_37 dim 1 : vector<8x256xf32>, i32 -> vector<8x256xf32>
    %149 = vector.broadcast %19 : vector<1x256xf32> to vector<8x256xf32>
    %150 = arith.mulf %148, %149 : vector<8x256xf32>
    %c255_i32_38 = arith.constant 255 : i32
    %151 = tpu.dynamic_rotate %138 by %c255_i32_38 dim 1 : vector<8x256xf32>, i32 -> vector<8x256xf32>
    %152 = vector.broadcast %23 : vector<1x256xf32> to vector<8x256xf32>
    %153 = arith.mulf %151, %152 : vector<8x256xf32>
    %c241_i32_39 = arith.constant 241 : i32
    %154 = tpu.dynamic_rotate %138 by %c241_i32_39 dim 1 : vector<8x256xf32>, i32 -> vector<8x256xf32>
    %155 = vector.broadcast %26 : vector<1x256xf32> to vector<8x256xf32>
    %156 = arith.mulf %154, %155 : vector<8x256xf32>
    %c240_i32_40 = arith.constant 240 : i32
    %157 = tpu.dynamic_rotate %138 by %c240_i32_40 dim 1 : vector<8x256xf32>, i32 -> vector<8x256xf32>
    %158 = vector.broadcast %15 : vector<1x256xf32> to vector<8x256xf32>
    %159 = arith.mulf %157, %158 : vector<8x256xf32>
    %c239_i32_41 = arith.constant 239 : i32
    %160 = tpu.dynamic_rotate %138 by %c239_i32_41 dim 1 : vector<8x256xf32>, i32 -> vector<8x256xf32>
    %161 = vector.broadcast %27 : vector<1x256xf32> to vector<8x256xf32>
    %162 = arith.mulf %160, %161 : vector<8x256xf32>
    %163 = tpu.concatenate %141, %144, %147, %150, %138, %153, %156, %159, %162 in 0 : vector<8x256xf32>, vector<8x256xf32>, vector<8x256xf32>, vector<8x256xf32>, vector<8x256xf32>, vector<8x256xf32>, vector<8x256xf32>, vector<8x256xf32>, vector<8x256xf32> -> vector<72x256xf32>
    %c0_42 = arith.constant 0 : index
    %c0_43 = arith.constant 0 : index
    %c0_44 = arith.constant 0 : index
    %164 = vector.load %arg6[%c0_42, %c0_43, %c0_44] : memref<3x4x72xbf16, #tpu.memory_space<vmem>>, vector<1x4x72xbf16>
    %165 = vector.shape_cast %164 : vector<1x4x72xbf16> to vector<4x72xbf16>
    %166 = arith.truncf %163 : vector<72x256xf32> to vector<72x256xbf16>
    %cst_45 = arith.constant dense<0.000000e+00> : vector<4x256xf32>
    %167 = tpu.matmul %165, %166, %cst_45 {dimension_numbers = #tpu.dot_dimension_numbers<[1], [0], [0], [1], [0, 0, 1, 1], [], []>} : vector<4x72xbf16>, vector<72x256xbf16>, vector<4x256xf32> -> vector<4x256xf32>
    %168 = arith.addf %137, %167 : vector<4x256xf32>
    %c1 = arith.constant 1 : index
    %c0_46 = arith.constant 0 : index
    %c0_47 = arith.constant 0 : index
    %169 = vector.load %arg7[%c1, %c0_46, %c0_47] : memref<4x2x1xf32, #tpu.memory_space<vmem>>, vector<1x2x1xf32>
    %170 = vector.shape_cast %169 : vector<1x2x1xf32> to vector<2x1xf32>
    %c1_48 = arith.constant 1 : index
    %c0_49 = arith.constant 0 : index
    %c0_50 = arith.constant 0 : index
    %171 = vector.load %arg8[%c1_48, %c0_49, %c0_50] : memref<4x2x1xf32, #tpu.memory_space<vmem>>, vector<1x2x1xf32>
    %172 = vector.shape_cast %171 : vector<1x2x1xf32> to vector<2x1xf32>
    %173 = arith.mulf %168, %168 : vector<4x256xf32>
    %174 = tpu.concatenate %168, %173 in 0 : vector<4x256xf32>, vector<4x256xf32> -> vector<8x256xf32>
    %cst_51 = arith.constant dense<0.000000e+00> : vector<8xf32>
    %175 = vector.multi_reduction <add>, %174, %cst_51 [1] : vector<8x256xf32> to vector<8xf32>
    %176 = vector.shape_cast %175 : vector<8xf32> to vector<8x1xf32>
    %177 = vector.extract_strided_slice %176 {offsets = [0, 0], sizes = [4, 1], strides = [1, 1]} : vector<8x1xf32> to vector<4x1xf32>
    %178 = vector.extract_strided_slice %176 {offsets = [4, 0], sizes = [4, 1], strides = [1, 1]} : vector<8x1xf32> to vector<4x1xf32>
    %179 = vector.extract_strided_slice %177 {offsets = [0, 0], sizes = [2, 1], strides = [1, 1]} : vector<4x1xf32> to vector<2x1xf32>
    %180 = vector.extract_strided_slice %177 {offsets = [2, 0], sizes = [2, 1], strides = [1, 1]} : vector<4x1xf32> to vector<2x1xf32>
    %181 = arith.addf %179, %180 : vector<2x1xf32>
    %182 = vector.extract_strided_slice %178 {offsets = [0, 0], sizes = [2, 1], strides = [1, 1]} : vector<4x1xf32> to vector<2x1xf32>
    %183 = vector.extract_strided_slice %178 {offsets = [2, 0], sizes = [2, 1], strides = [1, 1]} : vector<4x1xf32> to vector<2x1xf32>
    %184 = arith.addf %182, %183 : vector<2x1xf32>
    %cst_52 = arith.constant 0.001953125 : f32
    %185 = vector.broadcast %cst_52 : f32 to vector<2x1xf32>
    %186 = arith.mulf %181, %185 : vector<2x1xf32>
    %cst_53 = arith.constant 0.001953125 : f32
    %187 = vector.broadcast %cst_53 : f32 to vector<2x1xf32>
    %188 = arith.mulf %184, %187 : vector<2x1xf32>
    %189 = arith.mulf %186, %186 : vector<2x1xf32>
    %190 = arith.subf %188, %189 : vector<2x1xf32>
    %cst_54 = arith.constant 9.99999974E-6 : f32
    %191 = vector.broadcast %cst_54 : f32 to vector<2x1xf32>
    %192 = arith.addf %190, %191 : vector<2x1xf32>
    %193 = math.rsqrt %192 : vector<2x1xf32>
    %194 = arith.mulf %170, %193 : vector<2x1xf32>
    %195 = arith.mulf %186, %194 : vector<2x1xf32>
    %196 = arith.subf %172, %195 : vector<2x1xf32>
    %197 = tpu.concatenate %194, %194 in 0 : vector<2x1xf32>, vector<2x1xf32> -> vector<4x1xf32>
    %198 = vector.broadcast %197 : vector<4x1xf32> to vector<4x256xf32>
    %199 = arith.mulf %168, %198 : vector<4x256xf32>
    %200 = tpu.concatenate %196, %196 in 0 : vector<2x1xf32>, vector<2x1xf32> -> vector<4x1xf32>
    %201 = vector.broadcast %200 : vector<4x1xf32> to vector<4x256xf32>
    %202 = arith.addf %199, %201 : vector<4x256xf32>
    %cst_55 = arith.constant 0.000000e+00 : f32
    %203 = vector.broadcast %cst_55 : f32 to vector<4x256xf32>
    %204 = arith.cmpf ogt, %202, %203 : vector<4x256xf32>
    %cst_56 = arith.constant 1.000000e-01 : f32
    %205 = vector.broadcast %cst_56 : f32 to vector<4x256xf32>
    %206 = arith.mulf %205, %202 : vector<4x256xf32>
    %207 = arith.select %204, %202, %206 : vector<4x256xi1>, vector<4x256xf32>
    %208 = vector.extract_strided_slice %95 {offsets = [8, 0], sizes = [4, 256], strides = [1, 1]} : vector<16x256xf32> to vector<4x256xf32>
    %209 = tpu.concatenate %207, %96 in 0 : vector<4x256xf32>, vector<4x256xf32> -> vector<8x256xf32>
    %c17_i32_57 = arith.constant 17 : i32
    %210 = tpu.dynamic_rotate %209 by %c17_i32_57 dim 1 : vector<8x256xf32>, i32 -> vector<8x256xf32>
    %211 = vector.broadcast %24 : vector<1x256xf32> to vector<8x256xf32>
    %212 = arith.mulf %210, %211 : vector<8x256xf32>
    %c16_i32_58 = arith.constant 16 : i32
    %213 = tpu.dynamic_rotate %209 by %c16_i32_58 dim 1 : vector<8x256xf32>, i32 -> vector<8x256xf32>
    %214 = vector.broadcast %11 : vector<1x256xf32> to vector<8x256xf32>
    %215 = arith.mulf %213, %214 : vector<8x256xf32>
    %c15_i32_59 = arith.constant 15 : i32
    %216 = tpu.dynamic_rotate %209 by %c15_i32_59 dim 1 : vector<8x256xf32>, i32 -> vector<8x256xf32>
    %217 = vector.broadcast %25 : vector<1x256xf32> to vector<8x256xf32>
    %218 = arith.mulf %216, %217 : vector<8x256xf32>
    %c1_i32_60 = arith.constant 1 : i32
    %219 = tpu.dynamic_rotate %209 by %c1_i32_60 dim 1 : vector<8x256xf32>, i32 -> vector<8x256xf32>
    %220 = vector.broadcast %19 : vector<1x256xf32> to vector<8x256xf32>
    %221 = arith.mulf %219, %220 : vector<8x256xf32>
    %c255_i32_61 = arith.constant 255 : i32
    %222 = tpu.dynamic_rotate %209 by %c255_i32_61 dim 1 : vector<8x256xf32>, i32 -> vector<8x256xf32>
    %223 = vector.broadcast %23 : vector<1x256xf32> to vector<8x256xf32>
    %224 = arith.mulf %222, %223 : vector<8x256xf32>
    %c241_i32_62 = arith.constant 241 : i32
    %225 = tpu.dynamic_rotate %209 by %c241_i32_62 dim 1 : vector<8x256xf32>, i32 -> vector<8x256xf32>
    %226 = vector.broadcast %26 : vector<1x256xf32> to vector<8x256xf32>
    %227 = arith.mulf %225, %226 : vector<8x256xf32>
    %c240_i32_63 = arith.constant 240 : i32
    %228 = tpu.dynamic_rotate %209 by %c240_i32_63 dim 1 : vector<8x256xf32>, i32 -> vector<8x256xf32>
    %229 = vector.broadcast %15 : vector<1x256xf32> to vector<8x256xf32>
    %230 = arith.mulf %228, %229 : vector<8x256xf32>
    %c239_i32_64 = arith.constant 239 : i32
    %231 = tpu.dynamic_rotate %209 by %c239_i32_64 dim 1 : vector<8x256xf32>, i32 -> vector<8x256xf32>
    %232 = vector.broadcast %27 : vector<1x256xf32> to vector<8x256xf32>
    %233 = arith.mulf %231, %232 : vector<8x256xf32>
    %234 = tpu.concatenate %212, %215, %218, %221, %209, %224, %227, %230, %233 in 0 : vector<8x256xf32>, vector<8x256xf32>, vector<8x256xf32>, vector<8x256xf32>, vector<8x256xf32>, vector<8x256xf32>, vector<8x256xf32>, vector<8x256xf32>, vector<8x256xf32> -> vector<72x256xf32>
    %c1_65 = arith.constant 1 : index
    %c0_66 = arith.constant 0 : index
    %c0_67 = arith.constant 0 : index
    %235 = vector.load %arg6[%c1_65, %c0_66, %c0_67] : memref<3x4x72xbf16, #tpu.memory_space<vmem>>, vector<1x4x72xbf16>
    %236 = vector.shape_cast %235 : vector<1x4x72xbf16> to vector<4x72xbf16>
    %237 = arith.truncf %234 : vector<72x256xf32> to vector<72x256xbf16>
    %cst_68 = arith.constant dense<0.000000e+00> : vector<4x256xf32>
    %238 = tpu.matmul %236, %237, %cst_68 {dimension_numbers = #tpu.dot_dimension_numbers<[1], [0], [0], [1], [0, 0, 1, 1], [], []>} : vector<4x72xbf16>, vector<72x256xbf16>, vector<4x256xf32> -> vector<4x256xf32>
    %239 = arith.addf %208, %238 : vector<4x256xf32>
    %c2 = arith.constant 2 : index
    %c0_69 = arith.constant 0 : index
    %c0_70 = arith.constant 0 : index
    %240 = vector.load %arg7[%c2, %c0_69, %c0_70] : memref<4x2x1xf32, #tpu.memory_space<vmem>>, vector<1x2x1xf32>
    %241 = vector.shape_cast %240 : vector<1x2x1xf32> to vector<2x1xf32>
    %c2_71 = arith.constant 2 : index
    %c0_72 = arith.constant 0 : index
    %c0_73 = arith.constant 0 : index
    %242 = vector.load %arg8[%c2_71, %c0_72, %c0_73] : memref<4x2x1xf32, #tpu.memory_space<vmem>>, vector<1x2x1xf32>
    %243 = vector.shape_cast %242 : vector<1x2x1xf32> to vector<2x1xf32>
    %244 = arith.mulf %239, %239 : vector<4x256xf32>
    %245 = tpu.concatenate %239, %244 in 0 : vector<4x256xf32>, vector<4x256xf32> -> vector<8x256xf32>
    %cst_74 = arith.constant dense<0.000000e+00> : vector<8xf32>
    %246 = vector.multi_reduction <add>, %245, %cst_74 [1] : vector<8x256xf32> to vector<8xf32>
    %247 = vector.shape_cast %246 : vector<8xf32> to vector<8x1xf32>
    %248 = vector.extract_strided_slice %247 {offsets = [0, 0], sizes = [4, 1], strides = [1, 1]} : vector<8x1xf32> to vector<4x1xf32>
    %249 = vector.extract_strided_slice %247 {offsets = [4, 0], sizes = [4, 1], strides = [1, 1]} : vector<8x1xf32> to vector<4x1xf32>
    %250 = vector.extract_strided_slice %248 {offsets = [0, 0], sizes = [2, 1], strides = [1, 1]} : vector<4x1xf32> to vector<2x1xf32>
    %251 = vector.extract_strided_slice %248 {offsets = [2, 0], sizes = [2, 1], strides = [1, 1]} : vector<4x1xf32> to vector<2x1xf32>
    %252 = arith.addf %250, %251 : vector<2x1xf32>
    %253 = vector.extract_strided_slice %249 {offsets = [0, 0], sizes = [2, 1], strides = [1, 1]} : vector<4x1xf32> to vector<2x1xf32>
    %254 = vector.extract_strided_slice %249 {offsets = [2, 0], sizes = [2, 1], strides = [1, 1]} : vector<4x1xf32> to vector<2x1xf32>
    %255 = arith.addf %253, %254 : vector<2x1xf32>
    %cst_75 = arith.constant 0.001953125 : f32
    %256 = vector.broadcast %cst_75 : f32 to vector<2x1xf32>
    %257 = arith.mulf %252, %256 : vector<2x1xf32>
    %cst_76 = arith.constant 0.001953125 : f32
    %258 = vector.broadcast %cst_76 : f32 to vector<2x1xf32>
    %259 = arith.mulf %255, %258 : vector<2x1xf32>
    %260 = arith.mulf %257, %257 : vector<2x1xf32>
    %261 = arith.subf %259, %260 : vector<2x1xf32>
    %cst_77 = arith.constant 9.99999974E-6 : f32
    %262 = vector.broadcast %cst_77 : f32 to vector<2x1xf32>
    %263 = arith.addf %261, %262 : vector<2x1xf32>
    %264 = math.rsqrt %263 : vector<2x1xf32>
    %265 = arith.mulf %241, %264 : vector<2x1xf32>
    %266 = arith.mulf %257, %265 : vector<2x1xf32>
    %267 = arith.subf %243, %266 : vector<2x1xf32>
    %268 = tpu.concatenate %265, %265 in 0 : vector<2x1xf32>, vector<2x1xf32> -> vector<4x1xf32>
    %269 = vector.broadcast %268 : vector<4x1xf32> to vector<4x256xf32>
    %270 = arith.mulf %239, %269 : vector<4x256xf32>
    %271 = tpu.concatenate %267, %267 in 0 : vector<2x1xf32>, vector<2x1xf32> -> vector<4x1xf32>
    %272 = vector.broadcast %271 : vector<4x1xf32> to vector<4x256xf32>
    %273 = arith.addf %270, %272 : vector<4x256xf32>
    %cst_78 = arith.constant 0.000000e+00 : f32
    %274 = vector.broadcast %cst_78 : f32 to vector<4x256xf32>
    %275 = arith.cmpf ogt, %273, %274 : vector<4x256xf32>
    %cst_79 = arith.constant 1.000000e-01 : f32
    %276 = vector.broadcast %cst_79 : f32 to vector<4x256xf32>
    %277 = arith.mulf %276, %273 : vector<4x256xf32>
    %278 = arith.select %275, %273, %277 : vector<4x256xi1>, vector<4x256xf32>
    %279 = vector.extract_strided_slice %95 {offsets = [12, 0], sizes = [4, 256], strides = [1, 1]} : vector<16x256xf32> to vector<4x256xf32>
    %280 = tpu.concatenate %278, %96 in 0 : vector<4x256xf32>, vector<4x256xf32> -> vector<8x256xf32>
    %c17_i32_80 = arith.constant 17 : i32
    %281 = tpu.dynamic_rotate %280 by %c17_i32_80 dim 1 : vector<8x256xf32>, i32 -> vector<8x256xf32>
    %282 = vector.broadcast %24 : vector<1x256xf32> to vector<8x256xf32>
    %283 = arith.mulf %281, %282 : vector<8x256xf32>
    %c16_i32_81 = arith.constant 16 : i32
    %284 = tpu.dynamic_rotate %280 by %c16_i32_81 dim 1 : vector<8x256xf32>, i32 -> vector<8x256xf32>
    %285 = vector.broadcast %11 : vector<1x256xf32> to vector<8x256xf32>
    %286 = arith.mulf %284, %285 : vector<8x256xf32>
    %c15_i32_82 = arith.constant 15 : i32
    %287 = tpu.dynamic_rotate %280 by %c15_i32_82 dim 1 : vector<8x256xf32>, i32 -> vector<8x256xf32>
    %288 = vector.broadcast %25 : vector<1x256xf32> to vector<8x256xf32>
    %289 = arith.mulf %287, %288 : vector<8x256xf32>
    %c1_i32_83 = arith.constant 1 : i32
    %290 = tpu.dynamic_rotate %280 by %c1_i32_83 dim 1 : vector<8x256xf32>, i32 -> vector<8x256xf32>
    %291 = vector.broadcast %19 : vector<1x256xf32> to vector<8x256xf32>
    %292 = arith.mulf %290, %291 : vector<8x256xf32>
    %c255_i32_84 = arith.constant 255 : i32
    %293 = tpu.dynamic_rotate %280 by %c255_i32_84 dim 1 : vector<8x256xf32>, i32 -> vector<8x256xf32>
    %294 = vector.broadcast %23 : vector<1x256xf32> to vector<8x256xf32>
    %295 = arith.mulf %293, %294 : vector<8x256xf32>
    %c241_i32_85 = arith.constant 241 : i32
    %296 = tpu.dynamic_rotate %280 by %c241_i32_85 dim 1 : vector<8x256xf32>, i32 -> vector<8x256xf32>
    %297 = vector.broadcast %26 : vector<1x256xf32> to vector<8x256xf32>
    %298 = arith.mulf %296, %297 : vector<8x256xf32>
    %c240_i32_86 = arith.constant 240 : i32
    %299 = tpu.dynamic_rotate %280 by %c240_i32_86 dim 1 : vector<8x256xf32>, i32 -> vector<8x256xf32>
    %300 = vector.broadcast %15 : vector<1x256xf32> to vector<8x256xf32>
    %301 = arith.mulf %299, %300 : vector<8x256xf32>
    %c239_i32_87 = arith.constant 239 : i32
    %302 = tpu.dynamic_rotate %280 by %c239_i32_87 dim 1 : vector<8x256xf32>, i32 -> vector<8x256xf32>
    %303 = vector.broadcast %27 : vector<1x256xf32> to vector<8x256xf32>
    %304 = arith.mulf %302, %303 : vector<8x256xf32>
    %305 = tpu.concatenate %283, %286, %289, %292, %280, %295, %298, %301, %304 in 0 : vector<8x256xf32>, vector<8x256xf32>, vector<8x256xf32>, vector<8x256xf32>, vector<8x256xf32>, vector<8x256xf32>, vector<8x256xf32>, vector<8x256xf32>, vector<8x256xf32> -> vector<72x256xf32>
    %c2_88 = arith.constant 2 : index
    %c0_89 = arith.constant 0 : index
    %c0_90 = arith.constant 0 : index
    %306 = vector.load %arg6[%c2_88, %c0_89, %c0_90] : memref<3x4x72xbf16, #tpu.memory_space<vmem>>, vector<1x4x72xbf16>
    %307 = vector.shape_cast %306 : vector<1x4x72xbf16> to vector<4x72xbf16>
    %308 = arith.truncf %305 : vector<72x256xf32> to vector<72x256xbf16>
    %cst_91 = arith.constant dense<0.000000e+00> : vector<4x256xf32>
    %309 = tpu.matmul %307, %308, %cst_91 {dimension_numbers = #tpu.dot_dimension_numbers<[1], [0], [0], [1], [0, 0, 1, 1], [], []>} : vector<4x72xbf16>, vector<72x256xbf16>, vector<4x256xf32> -> vector<4x256xf32>
    %310 = arith.addf %279, %309 : vector<4x256xf32>
    %c3 = arith.constant 3 : index
    %c0_92 = arith.constant 0 : index
    %c0_93 = arith.constant 0 : index
    %311 = vector.load %arg7[%c3, %c0_92, %c0_93] : memref<4x2x1xf32, #tpu.memory_space<vmem>>, vector<1x2x1xf32>
    %312 = vector.shape_cast %311 : vector<1x2x1xf32> to vector<2x1xf32>
    %c3_94 = arith.constant 3 : index
    %c0_95 = arith.constant 0 : index
    %c0_96 = arith.constant 0 : index
    %313 = vector.load %arg8[%c3_94, %c0_95, %c0_96] : memref<4x2x1xf32, #tpu.memory_space<vmem>>, vector<1x2x1xf32>
    %314 = vector.shape_cast %313 : vector<1x2x1xf32> to vector<2x1xf32>
    %315 = arith.mulf %310, %310 : vector<4x256xf32>
    %316 = tpu.concatenate %310, %315 in 0 : vector<4x256xf32>, vector<4x256xf32> -> vector<8x256xf32>
    %cst_97 = arith.constant dense<0.000000e+00> : vector<8xf32>
    %317 = vector.multi_reduction <add>, %316, %cst_97 [1] : vector<8x256xf32> to vector<8xf32>
    %318 = vector.shape_cast %317 : vector<8xf32> to vector<8x1xf32>
    %319 = vector.extract_strided_slice %318 {offsets = [0, 0], sizes = [4, 1], strides = [1, 1]} : vector<8x1xf32> to vector<4x1xf32>
    %320 = vector.extract_strided_slice %318 {offsets = [4, 0], sizes = [4, 1], strides = [1, 1]} : vector<8x1xf32> to vector<4x1xf32>
    %321 = vector.extract_strided_slice %319 {offsets = [0, 0], sizes = [2, 1], strides = [1, 1]} : vector<4x1xf32> to vector<2x1xf32>
    %322 = vector.extract_strided_slice %319 {offsets = [2, 0], sizes = [2, 1], strides = [1, 1]} : vector<4x1xf32> to vector<2x1xf32>
    %323 = arith.addf %321, %322 : vector<2x1xf32>
    %324 = vector.extract_strided_slice %320 {offsets = [0, 0], sizes = [2, 1], strides = [1, 1]} : vector<4x1xf32> to vector<2x1xf32>
    %325 = vector.extract_strided_slice %320 {offsets = [2, 0], sizes = [2, 1], strides = [1, 1]} : vector<4x1xf32> to vector<2x1xf32>
    %326 = arith.addf %324, %325 : vector<2x1xf32>
    %cst_98 = arith.constant 0.001953125 : f32
    %327 = vector.broadcast %cst_98 : f32 to vector<2x1xf32>
    %328 = arith.mulf %323, %327 : vector<2x1xf32>
    %cst_99 = arith.constant 0.001953125 : f32
    %329 = vector.broadcast %cst_99 : f32 to vector<2x1xf32>
    %330 = arith.mulf %326, %329 : vector<2x1xf32>
    %331 = arith.mulf %328, %328 : vector<2x1xf32>
    %332 = arith.subf %330, %331 : vector<2x1xf32>
    %cst_100 = arith.constant 9.99999974E-6 : f32
    %333 = vector.broadcast %cst_100 : f32 to vector<2x1xf32>
    %334 = arith.addf %332, %333 : vector<2x1xf32>
    %335 = math.rsqrt %334 : vector<2x1xf32>
    %336 = arith.mulf %312, %335 : vector<2x1xf32>
    %337 = arith.mulf %328, %336 : vector<2x1xf32>
    %338 = arith.subf %314, %337 : vector<2x1xf32>
    %339 = tpu.concatenate %336, %336 in 0 : vector<2x1xf32>, vector<2x1xf32> -> vector<4x1xf32>
    %340 = vector.broadcast %339 : vector<4x1xf32> to vector<4x256xf32>
    %341 = arith.mulf %310, %340 : vector<4x256xf32>
    %342 = tpu.concatenate %338, %338 in 0 : vector<2x1xf32>, vector<2x1xf32> -> vector<4x1xf32>
    %343 = vector.broadcast %342 : vector<4x1xf32> to vector<4x256xf32>
    %344 = arith.addf %341, %343 : vector<4x256xf32>
    %cst_101 = arith.constant 0.000000e+00 : f32
    %345 = vector.broadcast %cst_101 : f32 to vector<4x256xf32>
    %346 = arith.cmpf ogt, %344, %345 : vector<4x256xf32>
    %cst_102 = arith.constant 1.000000e-01 : f32
    %347 = vector.broadcast %cst_102 : f32 to vector<4x256xf32>
    %348 = arith.mulf %347, %344 : vector<4x256xf32>
    %349 = arith.select %346, %344, %348 : vector<4x256xi1>, vector<4x256xf32>
    %350 = tpu.concatenate %136, %207, %278, %349 in 0 : vector<4x256xf32>, vector<4x256xf32>, vector<4x256xf32>, vector<4x256xf32> -> vector<16x256xf32>
    %c0_103 = arith.constant 0 : index
    %c0_104 = arith.constant 0 : index
    %351 = vector.load %arg9[%c0_103, %c0_104] : memref<16x16xbf16, #tpu.memory_space<vmem>>, vector<16x16xbf16>
    %352 = arith.truncf %350 : vector<16x256xf32> to vector<16x256xbf16>
    %cst_105 = arith.constant dense<0.000000e+00> : vector<16x256xf32>
    %353 = tpu.matmul %351, %352, %cst_105 {dimension_numbers = #tpu.dot_dimension_numbers<[1], [0], [0], [1], [0, 0, 1, 1], [], []>} : vector<16x16xbf16>, vector<16x256xbf16>, vector<16x256xf32> -> vector<16x256xf32>
    %c0_106 = arith.constant 0 : index
    %c0_107 = arith.constant 0 : index
    %354 = vector.load %arg10[%c0_106, %c0_107] : memref<8x1xf32, #tpu.memory_space<vmem>>, vector<8x1xf32>
    %c0_108 = arith.constant 0 : index
    %c0_109 = arith.constant 0 : index
    %355 = vector.load %arg11[%c0_108, %c0_109] : memref<8x1xf32, #tpu.memory_space<vmem>>, vector<8x1xf32>
    %356 = arith.mulf %353, %353 : vector<16x256xf32>
    %357 = tpu.concatenate %353, %356 in 0 : vector<16x256xf32>, vector<16x256xf32> -> vector<32x256xf32>
    %cst_110 = arith.constant dense<0.000000e+00> : vector<32xf32>
    %358 = vector.multi_reduction <add>, %357, %cst_110 [1] : vector<32x256xf32> to vector<32xf32>
    %359 = vector.shape_cast %358 : vector<32xf32> to vector<32x1xf32>
    %360 = vector.extract_strided_slice %359 {offsets = [0, 0], sizes = [16, 1], strides = [1, 1]} : vector<32x1xf32> to vector<16x1xf32>
    %361 = vector.extract_strided_slice %359 {offsets = [16, 0], sizes = [16, 1], strides = [1, 1]} : vector<32x1xf32> to vector<16x1xf32>
    %362 = vector.extract_strided_slice %360 {offsets = [0, 0], sizes = [8, 1], strides = [1, 1]} : vector<16x1xf32> to vector<8x1xf32>
    %363 = vector.extract_strided_slice %360 {offsets = [8, 0], sizes = [8, 1], strides = [1, 1]} : vector<16x1xf32> to vector<8x1xf32>
    %364 = arith.addf %362, %363 : vector<8x1xf32>
    %365 = vector.extract_strided_slice %361 {offsets = [0, 0], sizes = [8, 1], strides = [1, 1]} : vector<16x1xf32> to vector<8x1xf32>
    %366 = vector.extract_strided_slice %361 {offsets = [8, 0], sizes = [8, 1], strides = [1, 1]} : vector<16x1xf32> to vector<8x1xf32>
    %367 = arith.addf %365, %366 : vector<8x1xf32>
    %cst_111 = arith.constant 0.001953125 : f32
    %368 = vector.broadcast %cst_111 : f32 to vector<8x1xf32>
    %369 = arith.mulf %364, %368 : vector<8x1xf32>
    %cst_112 = arith.constant 0.001953125 : f32
    %370 = vector.broadcast %cst_112 : f32 to vector<8x1xf32>
    %371 = arith.mulf %367, %370 : vector<8x1xf32>
    %372 = arith.mulf %369, %369 : vector<8x1xf32>
    %373 = arith.subf %371, %372 : vector<8x1xf32>
    %cst_113 = arith.constant 9.99999974E-6 : f32
    %374 = vector.broadcast %cst_113 : f32 to vector<8x1xf32>
    %375 = arith.addf %373, %374 : vector<8x1xf32>
    %376 = math.rsqrt %375 : vector<8x1xf32>
    %377 = arith.mulf %354, %376 : vector<8x1xf32>
    %378 = arith.mulf %369, %377 : vector<8x1xf32>
    %379 = arith.subf %355, %378 : vector<8x1xf32>
    %380 = tpu.concatenate %377, %377 in 0 : vector<8x1xf32>, vector<8x1xf32> -> vector<16x1xf32>
    %381 = vector.broadcast %380 : vector<16x1xf32> to vector<16x256xf32>
    %382 = arith.mulf %353, %381 : vector<16x256xf32>
    %383 = tpu.concatenate %379, %379 in 0 : vector<8x1xf32>, vector<8x1xf32> -> vector<16x1xf32>
    %384 = vector.broadcast %383 : vector<16x1xf32> to vector<16x256xf32>
    %385 = arith.addf %382, %384 : vector<16x256xf32>
    %386 = arith.addf %385, %0 : vector<16x256xf32>
    %cst_114 = arith.constant 0.000000e+00 : f32
    %387 = vector.broadcast %cst_114 : f32 to vector<16x256xf32>
    %388 = arith.cmpf ogt, %386, %387 : vector<16x256xf32>
    %cst_115 = arith.constant 1.000000e-01 : f32
    %389 = vector.broadcast %cst_115 : f32 to vector<16x256xf32>
    %390 = arith.mulf %389, %386 : vector<16x256xf32>
    %391 = arith.select %388, %386, %390 : vector<16x256xi1>, vector<16x256xf32>
    %c0_116 = arith.constant 0 : index
    %c0_117 = arith.constant 0 : index
    %392 = vector.load %arg12[%c0_116, %c0_117] : memref<16x256xf32, #tpu.memory_space<vmem>>, vector<16x256xf32>
    tpu.vector_store %arg12[%c0_116, %c0_117], %391 {strides = array<i32>} : memref<16x256xf32, #tpu.memory_space<vmem>>, vector<16x256xf32>,
    return
  }
  func.func @transform_0(%arg0: i32) -> (i32, i32) {
    %c0_i32 = arith.constant 0 : i32
    %c0_i32_0 = arith.constant 0 : i32
    %c0_i32_1 = arith.constant 0 : i32
    return %c0_i32, %c0_i32_0 : i32, i32
  }
  func.func @transform_1(%arg0: i32) -> (i32, i32) {
    %c0_i32 = arith.constant 0 : i32
    %c0_i32_0 = arith.constant 0 : i32
    %c0_i32_1 = arith.constant 0 : i32
    return %c0_i32, %c0_i32_0 : i32, i32
  }
  func.func @transform_2(%arg0: i32) -> (i32, i32) {
    %c0_i32 = arith.constant 0 : i32
    %c0_i32_0 = arith.constant 0 : i32
    %c0_i32_1 = arith.constant 0 : i32
    return %c0_i32, %c0_i32_0 : i32, i32
  }
  func.func @transform_3(%arg0: i32) -> (i32, i32) {
    %c0_i32 = arith.constant 0 : i32
    %c0_i32_0 = arith.constant 0 : i32
    %c0_i32_1 = arith.constant 0 : i32
    return %c0_i32, %c0_i32_0 : i32, i32
  }
  func.func @transform_4(%arg0: i32) -> (i32, i32) {
    %c0_i32 = arith.constant 0 : i32
    %c0_i32_0 = arith.constant 0 : i32
    %c0_i32_1 = arith.constant 0 : i32
    return %c0_i32, %c0_i32_0 : i32, i32
  }
  func.func @transform_5(%arg0: i32) -> (i32, i32, i32) {
    %c0_i32 = arith.constant 0 : i32
    %c0_i32_0 = arith.constant 0 : i32
    %c0_i32_1 = arith.constant 0 : i32
    %c0_i32_2 = arith.constant 0 : i32
    return %c0_i32, %c0_i32_0, %c0_i32_1 : i32, i32, i32
  }
  func.func @transform_6(%arg0: i32) -> (i32, i32, i32) {
    %c0_i32 = arith.constant 0 : i32
    %c0_i32_0 = arith.constant 0 : i32
    %c0_i32_1 = arith.constant 0 : i32
    %c0_i32_2 = arith.constant 0 : i32
    return %c0_i32, %c0_i32_0, %c0_i32_1 : i32, i32, i32
  }
  func.func @transform_7(%arg0: i32) -> (i32, i32, i32) {
    %c0_i32 = arith.constant 0 : i32
    %c0_i32_0 = arith.constant 0 : i32
    %c0_i32_1 = arith.constant 0 : i32
    %c0_i32_2 = arith.constant 0 : i32
    return %c0_i32, %c0_i32_0, %c0_i32_1 : i32, i32, i32
  }
  func.func @transform_8(%arg0: i32) -> (i32, i32) {
    %c0_i32 = arith.constant 0 : i32
    %c0_i32_0 = arith.constant 0 : i32
    %c0_i32_1 = arith.constant 0 : i32
    return %c0_i32, %c0_i32_0 : i32, i32
  }
  func.func @transform_9(%arg0: i32) -> (i32, i32) {
    %c0_i32 = arith.constant 0 : i32
    %c0_i32_0 = arith.constant 0 : i32
    %c0_i32_1 = arith.constant 0 : i32
    return %c0_i32, %c0_i32_0 : i32, i32
  }
  func.func @transform_10(%arg0: i32) -> (i32, i32) {
    %c0_i32 = arith.constant 0 : i32
    %c0_i32_0 = arith.constant 0 : i32
    %c0_i32_1 = arith.constant 0 : i32
    return %c0_i32, %c0_i32_0 : i32, i32
  }
  func.func @transform_11(%arg0: i32) -> (i32, i32) {
    %c0_i32 = arith.constant 0 : i32
    %c0_i32_0 = arith.constant 0 : i32
    %c0_i32_1 = arith.constant 0 : i32
    return %c0_i32, %c0_i32_0 : i32, i32
  }
}

</mosaic_0001>

<llo_original>
// kernel: res2pcs_forward.1
$region0: #{res2pcs_forward.1}
  #allocation0 [shape = 'u32[]', space=smem, size = 0x4, offset = 0x4, fixed_abs, tag = 'smem constant byte address 0x4 - core index']
  #allocation1 [shape = 'u32[144,128]{1,0:T(1,128)}', space=vmem, size = 0x12000, scoped, tag = 'internal scratch']
  %s0 = inlined_call_operand.vmem [shape: f32[16,256], index: 0, kind: input, shape index: {}]
  %s1 = inlined_call_operand.vmem [shape: bf16[16,16], index: 1, kind: input, shape index: {}]
  %s2 = inlined_call_operand.vmem [shape: f32[8,1], index: 2, kind: input, shape index: {}]
  %s3 = inlined_call_operand.vmem [shape: f32[8,1], index: 3, kind: input, shape index: {}]
  %s4 = inlined_call_operand.vmem [shape: bf16[16,144], index: 4, kind: input, shape index: {}]
  %s5 = inlined_call_operand.vmem [shape: bf16[3,4,72], index: 5, kind: input, shape index: {}]
  %s6 = inlined_call_operand.vmem [shape: f32[4,2,1], index: 6, kind: input, shape index: {}]
  %s7 = inlined_call_operand.vmem [shape: f32[4,2,1], index: 7, kind: input, shape index: {}]
  %s8 = inlined_call_operand.vmem [shape: bf16[16,16], index: 8, kind: input, shape index: {}]
  %s9 = inlined_call_operand.vmem [shape: f32[8,1], index: 9, kind: input, shape index: {}]
  %s10 = inlined_call_operand.vmem [shape: f32[8,1], index: 10, kind: input, shape index: {}]
  %s11 = inlined_call_operand.vmem [shape: f32[16,256], index: 11, kind: output, shape index: {}]
  %s12 = sld [smem:[#allocation0]]
  $region54: #{res2pcs_forward.1} parent=0
    _
  %s14 = ssub.s32 1, %s12
  %s15 = scalar_select 0, %s14, %s12
  // Predicated region
  $region2: #{res2pcs_forward.1} parent=0 // pred_check
    _
  $region3: #{res2pcs_forward.1} parent=0 // pred_check_branch
    %17 = sbr.rel (0) target = $region5
  $region4: #{res2pcs_forward.1} parent=0 // pred_region
    _
  $region5: #{res2pcs_forward.1} parent=0 // pred_fallthru
    _
  // Predicated region
  $region6: #{res2pcs_forward.1} parent=0 // pred_check
    _
  $region7: #{res2pcs_forward.1} parent=0 // pred_check_branch
    %19 = sbr.rel (0) target = $region9
  $region8: #{res2pcs_forward.1} parent=0 // pred_region
    _
  $region9: #{res2pcs_forward.1} parent=0 // pred_fallthru
    _
  // Predicated region
  $region10: #{res2pcs_forward.1} parent=0 // pred_check
    _
  $region11: #{res2pcs_forward.1} parent=0 // pred_check_branch
    %21 = sbr.rel (0) target = $region13
  $region12: #{res2pcs_forward.1} parent=0 // pred_region
    _
  $region13: #{res2pcs_forward.1} parent=0 // pred_fallthru
    _
  // Predicated region
  $region14: #{res2pcs_forward.1} parent=0 // pred_check
    _
  $region15: #{res2pcs_forward.1} parent=0 // pred_check_branch
    %23 = sbr.rel (0) target = $region17
  $region16: #{res2pcs_forward.1} parent=0 // pred_region
    _
  $region17: #{res2pcs_forward.1} parent=0 // pred_fallthru
    _
  // Predicated region
  $region18: #{res2pcs_forward.1} parent=0 // pred_check
    _
  $region19: #{res2pcs_forward.1} parent=0 // pred_check_branch
    %25 = sbr.rel (0) target = $region21
  $region20: #{res2pcs_forward.1} parent=0 // pred_region
    _
  $region21: #{res2pcs_forward.1} parent=0 // pred_fallthru
    _
  // Predicated region
  $region22: #{res2pcs_forward.1} parent=0 // pred_check
    _
  $region23: #{res2pcs_forward.1} parent=0 // pred_check_branch
    %27 = sbr.rel (0) target = $region25
  $region24: #{res2pcs_forward.1} parent=0 // pred_region
    _
  $region25: #{res2pcs_forward.1} parent=0 // pred_fallthru
    _
  // Predicated region
  $region26: #{res2pcs_forward.1} parent=0 // pred_check
    _
  $region27: #{res2pcs_forward.1} parent=0 // pred_check_branch
    %29 = sbr.rel (0) target = $region29
  $region28: #{res2pcs_forward.1} parent=0 // pred_region
    _
  $region29: #{res2pcs_forward.1} parent=0 // pred_fallthru
    _
  // Predicated region
  $region30: #{res2pcs_forward.1} parent=0 // pred_check
    _
  $region31: #{res2pcs_forward.1} parent=0 // pred_check_branch
    %31 = sbr.rel (0) target = $region33
  $region32: #{res2pcs_forward.1} parent=0 // pred_region
    _
  $region33: #{res2pcs_forward.1} parent=0 // pred_fallthru
    _
  // Predicated region
  $region34: #{res2pcs_forward.1} parent=0 // pred_check
    _
  $region35: #{res2pcs_forward.1} parent=0 // pred_check_branch
    %33 = sbr.rel (0) target = $region37
  $region36: #{res2pcs_forward.1} parent=0 // pred_region
    _
  $region37: #{res2pcs_forward.1} parent=0 // pred_fallthru
    _
  // Predicated region
  $region38: #{res2pcs_forward.1} parent=0 // pred_check
    _
  $region39: #{res2pcs_forward.1} parent=0 // pred_check_branch
    %35 = sbr.rel (0) target = $region41
  $region40: #{res2pcs_forward.1} parent=0 // pred_region
    _
  $region41: #{res2pcs_forward.1} parent=0 // pred_fallthru
    _
  // Predicated region
  $region42: #{res2pcs_forward.1} parent=0 // pred_check
    _
  $region43: #{res2pcs_forward.1} parent=0 // pred_check_branch
    %37 = sbr.rel (0) target = $region45
  $region44: #{res2pcs_forward.1} parent=0 // pred_region
    _
  $region45: #{res2pcs_forward.1} parent=0 // pred_fallthru
    _
  %v39 = vld [vmem:[%s0] sm:$0xff]
  %v40 = vld [vmem:[%s0 + $0x8] sm:$0xff]
  %v41 = vld [vmem:[%s0 + $0x10] sm:$0xff]
  %v42 = vld [vmem:[%s0 + $0x18] sm:$0xff]
  %v43 = vlaneseq
  %v44 = vand.u32 %v43, 127
  %v45 = vadd.s32 %v44, 128
  %v46 = vand.u32 %v44, 15
  %v47 = vand.u32 %v45, 15
  %v48 = vshra.s32 %v44, 4
  %v49 = vshra.s32 %v45, 4
  %v50 = vand.u32 %v48, 15
  %v51 = vand.u32 %v49, 15
  %vm52 = vcmp.ge.s32.totalorder %v50, 1
  %vm53 = vcmp.ge.s32.totalorder %v51, 1
  %v54 = vsel %vm52, 1, 0
  %v55 = vsel %vm53, 1, 0
  %v56 = vcvt.s32.f32 %v54
  %v57 = vcvt.s32.f32 %v55
  %vm58 = vcmp.le.s32.totalorder %v50, 14
  %vm59 = vcmp.le.s32.totalorder %v51, 14
  %v60 = vsel %vm58, 1, 0
  %v61 = vsel %vm59, 1, 0
  %v62 = vcvt.s32.f32 %v60
  %v63 = vcvt.s32.f32 %v61
  %vm64 = vcmp.ge.s32.totalorder %v46, 1
  %vm65 = vcmp.ge.s32.totalorder %v47, 1
  %v66 = vsel %vm64, 1, 0
  %v67 = vsel %vm65, 1, 0
  %v68 = vcvt.s32.f32 %v66
  %v69 = vcvt.s32.f32 %v67
  %vm70 = vcmp.le.s32.totalorder %v46, 14
  %vm71 = vcmp.le.s32.totalorder %v47, 14
  %v72 = vsel %vm70, 1, 0
  %v73 = vsel %vm71, 1, 0
  %v74 = vcvt.s32.f32 %v72
  %v75 = vcvt.s32.f32 %v73
  %v76 = vmul.f32 %v56, %v68
  %v77 = vmul.f32 %v57, %v69
  %v78 = vmul.f32 %v56, %v74
  %v79 = vmul.f32 %v57, %v75
  %v80 = vmul.f32 %v62, %v68
  %v81 = vmul.f32 %v63, %v69
  %v82 = vmul.f32 %v62, %v74
  %v83 = vmul.f32 %v63, %v75
  %v84 = vld [vmem:[%s1] sm:$0xf]
  %v85 = vld [vmem:[%s1 + $0x4] sm:$0xf]
  %v86 = vpack.c.bf16 %v41, %v39
  %v87 = vpack.c.bf16 %v42, %v40
  %v90 = vunpack.c.l.b16 %v84
  %v91 = vunpack.c.l.b16 %v85
  %v92 = vpack.c.b16 %v91, %v90
  %vm93 = vcmask 130048
  %v95 = vsel %vm93, %v92, 0
  %97 = vmatprep.subr.bf16.mxu0 0
  %98 = vmatpush1.bf16.msra.mxu0 0
  %99 = vmatprep.subr.bf16.mxu0 0
  %100 = vmatpush1.bf16.msra.mxu0 0
  %101 = vmatprep.subr.bf16.mxu0 0
  %102 = vmatpush1.bf16.msra.mxu0 0
  %103 = vmatprep.subr.bf16.mxu0 0
  %104 = vmatpush1.bf16.msra.mxu0 0
  %105 = vmatprep.subr.bf16.mxu0 0
  %106 = vmatpush1.bf16.msra.mxu0 0
  %107 = vmatprep.subr.bf16.mxu0 0
  %108 = vmatpush1.bf16.msra.mxu0 0
  %109 = vmatprep.subr.bf16.mxu0 0
  %110 = vmatpush1.bf16.msra.mxu0 0
  %111 = vmatprep.subr.bf16.mxu0 %v87
  %112 = vmatpush1.bf16.msra.mxu0 %v86
  %113 = vmatprep.subr.bf16.mxu0 0
  %114 = vmatpush2.bf16.msra.mxu0 0
  %115 = vmatprep.subr.bf16.mxu0 0
  %116 = vmatpush2.bf16.msra.mxu0 0
  %117 = vmatprep.subr.bf16.mxu0 0
  %118 = vmatpush2.bf16.msra.mxu0 0
  %119 = vmatprep.subr.bf16.mxu0 0
  %120 = vmatpush2.bf16.msra.mxu0 0
  %121 = vmatprep.subr.bf16.mxu0 0
  %122 = vmatpush2.bf16.msra.mxu0 0
  %123 = vmatprep.subr.bf16.mxu0 0
  %124 = vmatpush2.bf16.msra.mxu0 0
  %125 = vmatprep.subr.bf16.mxu0 0
  %126 = vmatpush2.bf16.msra.mxu0 0
  %127 = vmatprep.subr.bf16.mxu0 0
  %128 = vmatpush2.bf16.msra.mxu0 0
  %129 = vmatprep.mubr.bf16.mxu0 0
  %130 = vmatmul.mubr.bf16.gmra.mxu0 %v95
  %v131 = vpop.f32.mrf.mxu0
  %v132 = vadd.f32 0.0, %v131
  %v133 = vpop.f32.mrf.mxu0
  %v134 = vadd.f32 0.0, %v133
  %v135 = vpop.f32.mrf.mxu0
  %v136 = vadd.f32 0.0, %v135
  %v137 = vpop.f32.mrf.mxu0
  %v138 = vadd.f32 0.0, %v137
  %139 = vdwg.mxu0
  %v140 = vld [vmem:[%s2] sm:$0xff]
  %v141 = vld [vmem:[%s3] sm:$0xff]
  %v142 = vmul.f32 %v132, %v132
  %v143 = vmul.f32 %v134, %v134
  %v144 = vmul.f32 %v136, %v136
  %v145 = vmul.f32 %v138, %v138
  %v146 = vadd.f32 %v132, %v134
  %147 = vadd.xlane.f32.xlu0 %v146
  %v148 = vpop.xlane.xlu0 %147
  %v149 = vadd.f32 %v136, %v138
  %150 = vadd.xlane.f32.xlu0 %v149
  %v151 = vpop.xlane.xlu0 %150
  %v152 = vadd.f32 %v142, %v143
  %153 = vadd.xlane.f32.xlu0 %v152
  %v154 = vpop.xlane.xlu0 %153
  %v155 = vadd.f32 %v144, %v145
  %156 = vadd.xlane.f32.xlu0 %v155
  %v157 = vpop.xlane.xlu0 %156
  %v158 = vadd.f32 %v148, %v151
  %v159 = vadd.f32 %v154, %v157
  %v160 = vmul.f32 %v158, 0.001953125
  %v161 = vmul.f32 %v159, 0.001953125
  %v162 = vmul.f32 %v160, %v160
  %v163 = vsub.f32 %v161, %v162
  %v164 = vadd.f32 %v163, 1e-05
  %v165 = vrsqrt.pop %v164
  %v166 = vmul.f32 %v140, %v165
  %v167 = vmul.f32 %v160, %v166
  %v168 = vsub.f32 %v141, %v167
  %170 = vset.pattern.permute.xlu0 0
  %171 = vperm.xlu0 %170, %v166
  %v172 = vpop.permute.xlu0 %171
  %v174 = vmul.f32 %v132, %v172
  %v175 = vmul.f32 %v134, %v172
  %v176 = vmul.f32 %v136, %v172
  %v177 = vmul.f32 %v138, %v172
  %179 = vset.pattern.permute.xlu0 0
  %180 = vperm.xlu0 %179, %v168
  %v181 = vpop.permute.xlu0 %180
  %v183 = vadd.f32 %v174, %v181
  %v184 = vadd.f32 %v175, %v181
  %v185 = vadd.f32 %v176, %v181
  %v186 = vadd.f32 %v177, %v181
  %vm187 = vcmp.gt.f32.partialorder %v183, 0.0
  %vm188 = vcmp.gt.f32.partialorder %v184, 0.0
  %vm189 = vcmp.gt.f32.partialorder %v185, 0.0
  %vm190 = vcmp.gt.f32.partialorder %v186, 0.0
  %v191 = vmul.f32 %v183, 0.1
  %v192 = vmul.f32 %v184, 0.1
  %v193 = vmul.f32 %v185, 0.1
  %v194 = vmul.f32 %v186, 0.1
  %v195 = vsel %vm187, %v183, %v191
  %v196 = vsel %vm188, %v184, %v192
  %v197 = vsel %vm189, %v185, %v193
  %v198 = vsel %vm190, %v186, %v194
  %199 = vrot.lane.b32.xlu0 %v195, 17
  %v200 = vpop.permute.xlu0 %199
  %201 = vrot.lane.b32.xlu0 %v197, 17
  %v202 = vpop.permute.xlu0 %201
  %203 = vrot.lane.b32.xlu0 %v196, 17
  %v204 = vpop.permute.xlu0 %203
  %205 = vrot.lane.b32.xlu0 %v198, 17
  %v206 = vpop.permute.xlu0 %205
  %vm207 = vcmp.lt.s32.totalorder %v44, 17
  %v208 = vsel %vm207, %v200, %v204
  %v209 = vsel %vm207, %v202, %v206
  %v210 = vsel %vm207, %v204, %v200
  %v211 = vsel %vm207, %v206, %v202
  %v212 = vmul.f32 %v210, %v76
  %v213 = vmul.f32 %v208, %v77
  %v214 = vmul.f32 %v211, %v76
  %v215 = vmul.f32 %v209, %v77
  %216 = vrot.lane.b32.xlu0 %v195, 16
  %v217 = vpop.permute.xlu0 %216
  %218 = vrot.lane.b32.xlu0 %v197, 16
  %v219 = vpop.permute.xlu0 %218
  %220 = vrot.lane.b32.xlu0 %v196, 16
  %v221 = vpop.permute.xlu0 %220
  %222 = vrot.lane.b32.xlu0 %v198, 16
  %v223 = vpop.permute.xlu0 %222
  %vm224 = vcmp.lt.s32.totalorder %v44, 16
  %v225 = vsel %vm224, %v217, %v221
  %v226 = vsel %vm224, %v219, %v223
  %v227 = vsel %vm224, %v221, %v217
  %v228 = vsel %vm224, %v223, %v219
  %v229 = vmul.f32 %v227, %v56
  %v230 = vmul.f32 %v225, %v57
  %v231 = vmul.f32 %v228, %v56
  %v232 = vmul.f32 %v226, %v57
  %233 = vrot.lane.b32.xlu0 %v195, 15
  %v234 = vpop.permute.xlu0 %233
  %235 = vrot.lane.b32.xlu0 %v197, 15
  %v236 = vpop.permute.xlu0 %235
  %237 = vrot.lane.b32.xlu0 %v196, 15
  %v238 = vpop.permute.xlu0 %237
  %239 = vrot.lane.b32.xlu0 %v198, 15
  %v240 = vpop.permute.xlu0 %239
  %vm241 = vcmp.lt.s32.totalorder %v44, 15
  %v242 = vsel %vm241, %v234, %v238
  %v243 = vsel %vm241, %v236, %v240
  %v244 = vsel %vm241, %v238, %v234
  %v245 = vsel %vm241, %v240, %v236
  %v246 = vmul.f32 %v244, %v78
  %v247 = vmul.f32 %v242, %v79
  %v248 = vmul.f32 %v245, %v78
  %v249 = vmul.f32 %v243, %v79
  %250 = vrot.lane.b32.xlu0 %v195, 1
  %v251 = vpop.permute.xlu0 %250
  %252 = vrot.lane.b32.xlu0 %v197, 1
  %v253 = vpop.permute.xlu0 %252
  %254 = vrot.lane.b32.xlu0 %v196, 1
  %v255 = vpop.permute.xlu0 %254
  %256 = vrot.lane.b32.xlu0 %v198, 1
  %v257 = vpop.permute.xlu0 %256
  %vm258 = vcmp.lt.s32.totalorder %v44, 1
  %v259 = vsel %vm258, %v251, %v255
  %v260 = vsel %vm258, %v253, %v257
  %v261 = vsel %vm258, %v255, %v251
  %v262 = vsel %vm258, %v257, %v253
  %v263 = vmul.f32 %v261, %v68
  %v264 = vmul.f32 %v259, %v69
  %v265 = vmul.f32 %v262, %v68
  %v266 = vmul.f32 %v260, %v69
  %267 = vrot.lane.b32.xlu0 %v195, 127
  %v268 = vpop.permute.xlu0 %267
  %269 = vrot.lane.b32.xlu0 %v197, 127
  %v270 = vpop.permute.xlu0 %269
  %271 = vrot.lane.b32.xlu0 %v196, 127
  %v272 = vpop.permute.xlu0 %271
  %273 = vrot.lane.b32.xlu0 %v198, 127
  %v274 = vpop.permute.xlu0 %273
  %vm275 = vcmp.lt.s32.totalorder %v44, 127
  %v276 = vsel %vm275, %v268, %v272
  %v277 = vsel %vm275, %v270, %v274
  %v278 = vsel %vm275, %v272, %v268
  %v279 = vsel %vm275, %v274, %v270
  %v280 = vmul.f32 %v276, %v74
  %v281 = vmul.f32 %v278, %v75
  %v282 = vmul.f32 %v277, %v74
  %v283 = vmul.f32 %v279, %v75
  %284 = vrot.lane.b32.xlu0 %v195, 113
  %v285 = vpop.permute.xlu0 %284
  %286 = vrot.lane.b32.xlu0 %v197, 113
  %v287 = vpop.permute.xlu0 %286
  %288 = vrot.lane.b32.xlu0 %v196, 113
  %v289 = vpop.permute.xlu0 %288
  %290 = vrot.lane.b32.xlu0 %v198, 113
  %v291 = vpop.permute.xlu0 %290
  %vm292 = vcmp.lt.s32.totalorder %v44, 113
  %v293 = vsel %vm292, %v285, %v289
  %v294 = vsel %vm292, %v287, %v291
  %v295 = vsel %vm292, %v289, %v285
  %v296 = vsel %vm292, %v291, %v287
  %v297 = vmul.f32 %v293, %v80
  %v298 = vmul.f32 %v295, %v81
  %v299 = vmul.f32 %v294, %v80
  %v300 = vmul.f32 %v296, %v81
  %301 = vrot.lane.b32.xlu0 %v195, 112
  %v302 = vpop.permute.xlu0 %301
  %303 = vrot.lane.b32.xlu0 %v197, 112
  %v304 = vpop.permute.xlu0 %303
  %305 = vrot.lane.b32.xlu0 %v196, 112
  %v306 = vpop.permute.xlu0 %305
  %307 = vrot.lane.b32.xlu0 %v198, 112
  %v308 = vpop.permute.xlu0 %307
  %vm309 = vcmp.lt.s32.totalorder %v44, 112
  %v310 = vsel %vm309, %v302, %v306
  %v311 = vsel %vm309, %v304, %v308
  %v312 = vsel %vm309, %v306, %v302
  %v313 = vsel %vm309, %v308, %v304
  %v314 = vmul.f32 %v310, %v62
  %v315 = vmul.f32 %v312, %v63
  %v316 = vmul.f32 %v311, %v62
  %v317 = vmul.f32 %v313, %v63
  %318 = vrot.lane.b32.xlu0 %v195, 111
  %v319 = vpop.permute.xlu0 %318
  %320 = vrot.lane.b32.xlu0 %v197, 111
  %v321 = vpop.permute.xlu0 %320
  %322 = vrot.lane.b32.xlu0 %v196, 111
  %v323 = vpop.permute.xlu0 %322
  %324 = vrot.lane.b32.xlu0 %v198, 111
  %v325 = vpop.permute.xlu0 %324
  %vm326 = vcmp.lt.s32.totalorder %v44, 111
  %v327 = vsel %vm326, %v319, %v323
  %v328 = vsel %vm326, %v321, %v325
  %v329 = vsel %vm326, %v323, %v319
  %v330 = vsel %vm326, %v325, %v321
  %v331 = vmul.f32 %v327, %v82
  %v332 = vmul.f32 %v329, %v83
  %v333 = vmul.f32 %v328, %v82
  %v334 = vmul.f32 %v330, %v83
  %v335 = vld [vmem:[%s4] sm:$0xff]
  %v336 = vld [vmem:[%s4 + $0x8] sm:$0xff]
  %v337 = vpack.c.bf16 %v214, %v212
  %v338 = vpack.c.bf16 %v215, %v213
  %v339 = vpack.c.bf16 %v231, %v229
  %v340 = vpack.c.bf16 %v232, %v230
  %v341 = vpack.c.bf16 %v248, %v246
  %v342 = vpack.c.bf16 %v249, %v247
  %v343 = vpack.c.bf16 %v265, %v263
  %v344 = vpack.c.bf16 %v266, %v264
  %v345 = vpack.c.bf16 %v197, %v195
  %v346 = vpack.c.bf16 %v198, %v196
  %v347 = vpack.c.bf16 %v282, %v280
  %v348 = vpack.c.bf16 %v283, %v281
  %v349 = vpack.c.bf16 %v299, %v297
  %v350 = vpack.c.bf16 %v300, %v298
  %v351 = vpack.c.bf16 %v316, %v314
  %v352 = vpack.c.bf16 %v317, %v315
  %v353 = vpack.c.bf16 %v333, %v331
  %v354 = vpack.c.bf16 %v334, %v332
  %v357 = vunpack.c.l.b16 %v335
  %v358 = vunpack.c.h.b16 %v335
  %v359 = vunpack.c.l.b16 %v336
  %v360 = vunpack.c.h.b16 %v336
  %v361 = vpack.c.b16 %v359, %v357
  %v362 = vpack.c.b16 %v360, %v358
  %v365 = vsel %vm93, %v362, 0
  %367 = vmatprep.subr.bf16.mxu0 %v352
  %368 = vmatpush1.bf16.msra.mxu0 %v351
  %369 = vmatprep.subr.bf16.mxu0 %v350
  %370 = vmatpush1.bf16.msra.mxu0 %v349
  %371 = vmatprep.subr.bf16.mxu0 %v348
  %372 = vmatpush1.bf16.msra.mxu0 %v347
  %373 = vmatprep.subr.bf16.mxu0 %v346
  %374 = vmatpush1.bf16.msra.mxu0 %v345
  %375 = vmatprep.subr.bf16.mxu0 %v344
  %376 = vmatpush1.bf16.msra.mxu0 %v343
  %377 = vmatprep.subr.bf16.mxu0 %v342
  %378 = vmatpush1.bf16.msra.mxu0 %v341
  %379 = vmatprep.subr.bf16.mxu0 %v340
  %380 = vmatpush1.bf16.msra.mxu0 %v339
  %381 = vmatprep.subr.bf16.mxu0 %v338
  %382 = vmatpush1.bf16.msra.mxu0 %v337
  %383 = vmatprep.subr.bf16.mxu0 0
  %384 = vmatpush2.bf16.msra.mxu0 0
  %385 = vmatprep.subr.bf16.mxu0 0
  %386 = vmatpush2.bf16.msra.mxu0 0
  %387 = vmatprep.subr.bf16.mxu0 0
  %388 = vmatpush2.bf16.msra.mxu0 0
  %389 = vmatprep.subr.bf16.mxu0 0
  %390 = vmatpush2.bf16.msra.mxu0 0
  %391 = vmatprep.subr.bf16.mxu0 0
  %392 = vmatpush2.bf16.msra.mxu0 0
  %393 = vmatprep.subr.bf16.mxu0 0
  %394 = vmatpush2.bf16.msra.mxu0 0
  %395 = vmatprep.subr.bf16.mxu0 0
  %396 = vmatpush2.bf16.msra.mxu0 0
  %397 = vmatprep.subr.bf16.mxu0 %v354
  %398 = vmatpush2.bf16.msra.mxu0 %v353
  %399 = vmatprep.mubr.bf16.mxu0 %v365
  %400 = vmatmul.mubr.bf16.gmra.mxu0 %v361
  %v401 = vpop.f32.mrf.mxu0
  %v402 = vadd.f32 0.0, %v401
  %v403 = vpop.f32.mrf.mxu0
  %v404 = vadd.f32 0.0, %v403
  %v405 = vpop.f32.mrf.mxu0
  %v406 = vadd.f32 0.0, %v405
  %v407 = vpop.f32.mrf.mxu0
  %v408 = vadd.f32 0.0, %v407
  %409 = vdwg.mxu0
  %v410 = vld [vmem:[%s6] sm:$0x3]
  %v411 = vld [vmem:[%s7] sm:$0x3]
  %v412 = vmul.f32 %v402, %v402
  %v413 = vmul.f32 %v404, %v404
  %v416 = vrot.slane %v412, 4
  %v417 = vrot.slane %v413, 4
  %vm420 = vcmask 1043456
  %v421 = vsel %vm420, %v402, %v416
  %v422 = vsel %vm420, %v404, %v417
  %v423 = vadd.f32 %v421, %v422
  %424 = vadd.xlane.f32.xlu0 %v423
  %v425 = vpop.xlane.xlu0 %424
  %v427 = vrot.slane %v425, 2
  %v429 = vadd.f32 %v425, %v427
  %v430 = vmul.f32 %v429, 0.001953125
  %v431 = vmul.f32 %v430, %v430
  %v433 = vrot.slane %v431, 4
  %v435 = vsub.f32 %v430, %v433
  %v436 = vadd.f32 %v435, 1e-05
  %v437 = vrsqrt.pop %v436
  %v439 = vrot.slane %v437, 4
  %v441 = vmul.f32 %v410, %v439
  %v442 = vmul.f32 %v430, %v441
  %v443 = vsub.f32 %v411, %v442
  %v445 = vrot.slane %v441, 6
  %vm447 = vcmask 1041408
  %v448 = vsel %vm447, %v441, %v445
  %450 = vset.pattern.permute.xlu0 0
  %451 = vperm.xlu0 %450, %v448
  %v452 = vpop.permute.xlu0 %451
  %v454 = vmul.f32 %v402, %v452
  %v455 = vmul.f32 %v404, %v452
  %v457 = vrot.slane %v443, 6
  %v459 = vsel %vm447, %v443, %v457
  %461 = vset.pattern.permute.xlu0 0
  %462 = vperm.xlu0 %461, %v459
  %v463 = vpop.permute.xlu0 %462
  %v465 = vadd.f32 %v454, %v463
  %v466 = vadd.f32 %v455, %v463
  %vm467 = vcmp.gt.f32.partialorder %v465, 0.0
  %vm468 = vcmp.gt.f32.partialorder %v466, 0.0
  %v469 = vmul.f32 %v465, 0.1
  %v470 = vmul.f32 %v466, 0.1
  %v471 = vsel %vm467, %v465, %v469
  %v472 = vsel %vm468, %v466, %v470
  %v473 = vsel %vm420, %v471, 0.0
  %v474 = vsel %vm420, %v472, 0.0
  %475 = vrot.lane.b32.xlu0 %v473, 17
  %v476 = vpop.permute.xlu0 %475
  %477 = vrot.lane.b32.xlu0 %v474, 17
  %v478 = vpop.permute.xlu0 %477
  %v479 = vsel %vm207, %v476, %v478
  %v480 = vsel %vm207, %v478, %v476
  %v481 = vmul.f32 %v480, %v76
  %v482 = vmul.f32 %v479, %v77
  %483 = vrot.lane.b32.xlu0 %v473, 16
  %v484 = vpop.permute.xlu0 %483
  %485 = vrot.lane.b32.xlu0 %v474, 16
  %v486 = vpop.permute.xlu0 %485
  %v487 = vsel %vm224, %v484, %v486
  %v488 = vsel %vm224, %v486, %v484
  %v489 = vmul.f32 %v488, %v56
  %v490 = vmul.f32 %v487, %v57
  %491 = vrot.lane.b32.xlu0 %v473, 15
  %v492 = vpop.permute.xlu0 %491
  %493 = vrot.lane.b32.xlu0 %v474, 15
  %v494 = vpop.permute.xlu0 %493
  %v495 = vsel %vm241, %v492, %v494
  %v496 = vsel %vm241, %v494, %v492
  %v497 = vmul.f32 %v496, %v78
  %v498 = vmul.f32 %v495, %v79
  %499 = vrot.lane.b32.xlu0 %v473, 1
  %v500 = vpop.permute.xlu0 %499
  %501 = vrot.lane.b32.xlu0 %v474, 1
  %v502 = vpop.permute.xlu0 %501
  %v503 = vsel %vm258, %v500, %v502
  %v504 = vsel %vm258, %v502, %v500
  %v505 = vmul.f32 %v504, %v68
  %v506 = vmul.f32 %v503, %v69
  %507 = vrot.lane.b32.xlu0 %v473, 127
  %v508 = vpop.permute.xlu0 %507
  %509 = vrot.lane.b32.xlu0 %v474, 127
  %v510 = vpop.permute.xlu0 %509
  %v511 = vsel %vm275, %v508, %v510
  %v512 = vsel %vm275, %v510, %v508
  %v513 = vmul.f32 %v511, %v74
  %v514 = vmul.f32 %v512, %v75
  %515 = vrot.lane.b32.xlu0 %v473, 113
  %v516 = vpop.permute.xlu0 %515
  %517 = vrot.lane.b32.xlu0 %v474, 113
  %v518 = vpop.permute.xlu0 %517
  %v519 = vsel %vm292, %v516, %v518
  %v520 = vsel %vm292, %v518, %v516
  %v521 = vmul.f32 %v519, %v80
  %v522 = vmul.f32 %v520, %v81
  %523 = vrot.lane.b32.xlu0 %v473, 112
  %v524 = vpop.permute.xlu0 %523
  %525 = vrot.lane.b32.xlu0 %v474, 112
  %v526 = vpop.permute.xlu0 %525
  %v527 = vsel %vm309, %v524, %v526
  %v528 = vsel %vm309, %v526, %v524
  %v529 = vmul.f32 %v527, %v62
  %v530 = vmul.f32 %v528, %v63
  %531 = vrot.lane.b32.xlu0 %v473, 111
  %v532 = vpop.permute.xlu0 %531
  %533 = vrot.lane.b32.xlu0 %v474, 111
  %v534 = vpop.permute.xlu0 %533
  %v535 = vsel %vm326, %v532, %v534
  %v536 = vsel %vm326, %v534, %v532
  %v537 = vmul.f32 %v535, %v82
  %v538 = vmul.f32 %v536, %v83
  %v539 = vld [vmem:[%s5] sm:$0x3]
  %v540 = vpack.c.bf16 %v489, %v481
  %v541 = vpack.c.bf16 %v490, %v482
  %v542 = vpack.c.bf16 %v505, %v497
  %v543 = vpack.c.bf16 %v506, %v498
  %v544 = vpack.c.bf16 %v513, %v473
  %v545 = vpack.c.bf16 %v514, %v474
  %v546 = vpack.c.bf16 %v529, %v521
  %v547 = vpack.c.bf16 %v530, %v522
  %v548 = vpack.c.bf16 %v537, %v537
  %v549 = vpack.c.bf16 %v538, %v538
  %vm550 = vcmask 588800
  %v552 = vsel %vm550, %v539, 0
  %v555 = vsel %vm420, %v548, 0
  %v558 = vsel %vm420, %v549, 0
  %560 = vmatprep.subr.bf16.mxu0 0
  %561 = vmatpush1.bf16.msra.mxu0 0
  %562 = vmatprep.subr.bf16.mxu0 0
  %563 = vmatpush1.bf16.msra.mxu0 0
  %564 = vmatprep.subr.bf16.mxu0 0
  %565 = vmatpush1.bf16.msra.mxu0 0
  %566 = vmatprep.subr.bf16.mxu0 %v558
  %567 = vmatpush1.bf16.msra.mxu0 %v555
  %568 = vmatprep.subr.bf16.mxu0 %v547
  %569 = vmatpush1.bf16.msra.mxu0 %v546
  %570 = vmatprep.subr.bf16.mxu0 %v545
  %571 = vmatpush1.bf16.msra.mxu0 %v544
  %572 = vmatprep.subr.bf16.mxu0 %v543
  %573 = vmatpush1.bf16.msra.mxu0 %v542
  %574 = vmatprep.subr.bf16.mxu0 %v541
  %575 = vmatpush1.bf16.msra.mxu0 %v540
  %576 = vmatprep.subr.bf16.mxu0 0
  %577 = vmatpush2.bf16.msra.mxu0 0
  %578 = vmatprep.subr.bf16.mxu0 0
  %579 = vmatpush2.bf16.msra.mxu0 0
  %580 = vmatprep.subr.bf16.mxu0 0
  %581 = vmatpush2.bf16.msra.mxu0 0
  %582 = vmatprep.subr.bf16.mxu0 0
  %583 = vmatpush2.bf16.msra.mxu0 0
  %584 = vmatprep.subr.bf16.mxu0 0
  %585 = vmatpush2.bf16.msra.mxu0 0
  %586 = vmatprep.subr.bf16.mxu0 0
  %587 = vmatpush2.bf16.msra.mxu0 0
  %588 = vmatprep.subr.bf16.mxu0 0
  %589 = vmatpush2.bf16.msra.mxu0 0
  %590 = vmatprep.subr.bf16.mxu0 0
  %591 = vmatpush2.bf16.msra.mxu0 0
  %592 = vmatprep.mubr.bf16.mxu0 0
  %593 = vmatmul.mubr.bf16.gmra.mxu0 %v552
  %v594 = vpop.f32.mrf.mxu0
  %v595 = vadd.f32 0.0, %v594
  %v596 = vpop.f32.mrf.mxu0
  %v597 = vadd.f32 0.0, %v596
  %v598 = vpop.f32.mrf.mxu0
  %v599 = vpop.f32.mrf.mxu0
  %600 = vdwg.mxu0
  %v603 = vrot.slane %v595, 4
  %v604 = vrot.slane %v597, 4
  %v607 = vadd.f32 %v402, %v603
  %v608 = vadd.f32 %v404, %v604
  %s609 = scalar_lea.vmem %s6, 2
  %v610 = vld [vmem:[%s609] sm:$0x3]
  %s611 = scalar_lea.vmem %s7, 2
  %v612 = vld [vmem:[%s611] sm:$0x3]
  %v613 = vmul.f32 %v607, %v607
  %v614 = vmul.f32 %v608, %v608
  %v617 = vrot.slane %v607, 4
  %v618 = vrot.slane %v608, 4
  %v621 = vsel %vm420, %v617, %v613
  %v622 = vsel %vm420, %v618, %v614
  %v623 = vadd.f32 %v621, %v622
  %624 = vadd.xlane.f32.xlu0 %v623
  %v625 = vpop.xlane.xlu0 %624
  %v627 = vrot.slane %v625, 2
  %v629 = vadd.f32 %v625, %v627
  %v630 = vmul.f32 %v629, 0.001953125
  %v631 = vmul.f32 %v630, %v630
  %v633 = vrot.slane %v631, 4
  %v635 = vsub.f32 %v630, %v633
  %v636 = vadd.f32 %v635, 1e-05
  %v637 = vrsqrt.pop %v636
  %v639 = vrot.slane %v637, 4
  %v641 = vmul.f32 %v610, %v639
  %v642 = vmul.f32 %v630, %v641
  %v643 = vsub.f32 %v612, %v642
  %v645 = vrot.slane %v641, 6
  %v647 = vsel %vm447, %v641, %v645
  %649 = vset.pattern.permute.xlu0 0
  %650 = vperm.xlu0 %649, %v647
  %v651 = vpop.permute.xlu0 %650
  %v652 = vrot.slane %v651, 4
  %v654 = vmul.f32 %v607, %v652
  %v655 = vmul.f32 %v608, %v652
  %v657 = vrot.slane %v643, 6
  %v659 = vsel %vm447, %v643, %v657
  %661 = vset.pattern.permute.xlu0 0
  %662 = vperm.xlu0 %661, %v659
  %v663 = vpop.permute.xlu0 %662
  %v664 = vrot.slane %v663, 4
  %v666 = vadd.f32 %v654, %v664
  %v667 = vadd.f32 %v655, %v664
  %vm668 = vcmp.gt.f32.partialorder %v666, 0.0
  %vm669 = vcmp.gt.f32.partialorder %v667, 0.0
  %v670 = vmul.f32 %v666, 0.1
  %v671 = vmul.f32 %v667, 0.1
  %v672 = vsel %vm668, %v666, %v670
  %v673 = vsel %vm669, %v667, %v671
  %v676 = vrot.slane %v672, 4
  %v677 = vrot.slane %v673, 4
  %v680 = vsel %vm420, %v676, 0.0
  %v681 = vsel %vm420, %v677, 0.0
  %682 = vrot.lane.b32.xlu0 %v680, 17
  %v683 = vpop.permute.xlu0 %682
  %684 = vrot.lane.b32.xlu0 %v681, 17
  %v685 = vpop.permute.xlu0 %684
  %v686 = vsel %vm207, %v683, %v685
  %v687 = vsel %vm207, %v685, %v683
  %v688 = vmul.f32 %v687, %v76
  %v689 = vmul.f32 %v686, %v77
  %690 = vrot.lane.b32.xlu0 %v680, 16
  %v691 = vpop.permute.xlu0 %690
  %692 = vrot.lane.b32.xlu0 %v681, 16
  %v693 = vpop.permute.xlu0 %692
  %v694 = vsel %vm224, %v691, %v693
  %v695 = vsel %vm224, %v693, %v691
  %v696 = vmul.f32 %v695, %v56
  %v697 = vmul.f32 %v694, %v57
  %698 = vrot.lane.b32.xlu0 %v680, 15
  %v699 = vpop.permute.xlu0 %698
  %700 = vrot.lane.b32.xlu0 %v681, 15
  %v701 = vpop.permute.xlu0 %700
  %v702 = vsel %vm241, %v699, %v701
  %v703 = vsel %vm241, %v701, %v699
  %v704 = vmul.f32 %v703, %v78
  %v705 = vmul.f32 %v702, %v79
  %706 = vrot.lane.b32.xlu0 %v680, 1
  %v707 = vpop.permute.xlu0 %706
  %708 = vrot.lane.b32.xlu0 %v681, 1
  %v709 = vpop.permute.xlu0 %708
  %v710 = vsel %vm258, %v707, %v709
  %v711 = vsel %vm258, %v709, %v707
  %v712 = vmul.f32 %v711, %v68
  %v713 = vmul.f32 %v710, %v69
  %714 = vrot.lane.b32.xlu0 %v680, 127
  %v715 = vpop.permute.xlu0 %714
  %716 = vrot.lane.b32.xlu0 %v681, 127
  %v717 = vpop.permute.xlu0 %716
  %v718 = vsel %vm275, %v715, %v717
  %v719 = vsel %vm275, %v717, %v715
  %v720 = vmul.f32 %v718, %v74
  %v721 = vmul.f32 %v719, %v75
  %722 = vrot.lane.b32.xlu0 %v680, 113
  %v723 = vpop.permute.xlu0 %722
  %724 = vrot.lane.b32.xlu0 %v681, 113
  %v725 = vpop.permute.xlu0 %724
  %v726 = vsel %vm292, %v723, %v725
  %v727 = vsel %vm292, %v725, %v723
  %v728 = vmul.f32 %v726, %v80
  %v729 = vmul.f32 %v727, %v81
  %730 = vrot.lane.b32.xlu0 %v680, 112
  %v731 = vpop.permute.xlu0 %730
  %732 = vrot.lane.b32.xlu0 %v681, 112
  %v733 = vpop.permute.xlu0 %732
  %v734 = vsel %vm309, %v731, %v733
  %v735 = vsel %vm309, %v733, %v731
  %v736 = vmul.f32 %v734, %v62
  %v737 = vmul.f32 %v735, %v63
  %738 = vrot.lane.b32.xlu0 %v680, 111
  %v739 = vpop.permute.xlu0 %738
  %740 = vrot.lane.b32.xlu0 %v681, 111
  %v741 = vpop.permute.xlu0 %740
  %v742 = vsel %vm326, %v739, %v741
  %v743 = vsel %vm326, %v741, %v739
  %v744 = vmul.f32 %v742, %v82
  %v745 = vmul.f32 %v743, %v83
  %s746 = scalar_lea.vmem %s5, 2
  %v747 = vld [vmem:[%s746] sm:$0x3]
  %v748 = vpack.c.bf16 %v696, %v688
  %v749 = vpack.c.bf16 %v697, %v689
  %v750 = vpack.c.bf16 %v712, %v704
  %v751 = vpack.c.bf16 %v713, %v705
  %v752 = vpack.c.bf16 %v720, %v680
  %v753 = vpack.c.bf16 %v721, %v681
  %v754 = vpack.c.bf16 %v736, %v728
  %v755 = vpack.c.bf16 %v737, %v729
  %v756 = vpack.c.bf16 %v744, %v744
  %v757 = vpack.c.bf16 %v745, %v745
  %v759 = vsel %vm550, %v747, 0
  %v762 = vsel %vm420, %v756, 0
  %v765 = vsel %vm420, %v757, 0
  %767 = vmatprep.subr.bf16.mxu0 0
  %768 = vmatpush1.bf16.msra.mxu0 0
  %769 = vmatprep.subr.bf16.mxu0 0
  %770 = vmatpush1.bf16.msra.mxu0 0
  %771 = vmatprep.subr.bf16.mxu0 0
  %772 = vmatpush1.bf16.msra.mxu0 0
  %773 = vmatprep.subr.bf16.mxu0 %v765
  %774 = vmatpush1.bf16.msra.mxu0 %v762
  %775 = vmatprep.subr.bf16.mxu0 %v755
  %776 = vmatpush1.bf16.msra.mxu0 %v754
  %777 = vmatprep.subr.bf16.mxu0 %v753
  %778 = vmatpush1.bf16.msra.mxu0 %v752
  %779 = vmatprep.subr.bf16.mxu0 %v751
  %780 = vmatpush1.bf16.msra.mxu0 %v750
  %781 = vmatprep.subr.bf16.mxu0 %v749
  %782 = vmatpush1.bf16.msra.mxu0 %v748
  %783 = vmatprep.subr.bf16.mxu0 0
  %784 = vmatpush2.bf16.msra.mxu0 0
  %785 = vmatprep.subr.bf16.mxu0 0
  %786 = vmatpush2.bf16.msra.mxu0 0
  %787 = vmatprep.subr.bf16.mxu0 0
  %788 = vmatpush2.bf16.msra.mxu0 0
  %789 = vmatprep.subr.bf16.mxu0 0
  %790 = vmatpush2.bf16.msra.mxu0 0
  %791 = vmatprep.subr.bf16.mxu0 0
  %792 = vmatpush2.bf16.msra.mxu0 0
  %793 = vmatprep.subr.bf16.mxu0 0
  %794 = vmatpush2.bf16.msra.mxu0 0
  %795 = vmatprep.subr.bf16.mxu0 0
  %796 = vmatpush2.bf16.msra.mxu0 0
  %797 = vmatprep.subr.bf16.mxu0 0
  %798 = vmatpush2.bf16.msra.mxu0 0
  %799 = vmatprep.mubr.bf16.mxu0 0
  %800 = vmatmul.mubr.bf16.gmra.mxu0 %v759
  %v801 = vpop.f32.mrf.mxu0
  %v802 = vadd.f32 0.0, %v801
  %v803 = vpop.f32.mrf.mxu0
  %v804 = vadd.f32 0.0, %v803
  %v805 = vpop.f32.mrf.mxu0
  %v806 = vpop.f32.mrf.mxu0
  %807 = vdwg.mxu0
  %v808 = vadd.f32 %v406, %v802
  %v809 = vadd.f32 %v408, %v804
  %s810 = scalar_lea.vmem %s6, 4
  %v811 = vld [vmem:[%s810] sm:$0x3]
  %s812 = scalar_lea.vmem %s7, 4
  %v813 = vld [vmem:[%s812] sm:$0x3]
  %v814 = vmul.f32 %v808, %v808
  %v815 = vmul.f32 %v809, %v809
  %v818 = vrot.slane %v814, 4
  %v819 = vrot.slane %v815, 4
  %v822 = vsel %vm420, %v808, %v818
  %v823 = vsel %vm420, %v809, %v819
  %v824 = vadd.f32 %v822, %v823
  %825 = vadd.xlane.f32.xlu0 %v824
  %v826 = vpop.xlane.xlu0 %825
  %v828 = vrot.slane %v826, 2
  %v830 = vadd.f32 %v826, %v828
  %v831 = vmul.f32 %v830, 0.001953125
  %v832 = vmul.f32 %v831, %v831
  %v834 = vrot.slane %v832, 4
  %v836 = vsub.f32 %v831, %v834
  %v837 = vadd.f32 %v836, 1e-05
  %v838 = vrsqrt.pop %v837
  %v840 = vrot.slane %v838, 4
  %v842 = vmul.f32 %v811, %v840
  %v843 = vmul.f32 %v831, %v842
  %v844 = vsub.f32 %v813, %v843
  %v846 = vrot.slane %v842, 6
  %v848 = vsel %vm447, %v842, %v846
  %850 = vset.pattern.permute.xlu0 0
  %851 = vperm.xlu0 %850, %v848
  %v852 = vpop.permute.xlu0 %851
  %v854 = vmul.f32 %v808, %v852
  %v855 = vmul.f32 %v809, %v852
  %v857 = vrot.slane %v844, 6
  %v859 = vsel %vm447, %v844, %v857
  %861 = vset.pattern.permute.xlu0 0
  %862 = vperm.xlu0 %861, %v859
  %v863 = vpop.permute.xlu0 %862
  %v865 = vadd.f32 %v854, %v863
  %v866 = vadd.f32 %v855, %v863
  %vm867 = vcmp.gt.f32.partialorder %v865, 0.0
  %vm868 = vcmp.gt.f32.partialorder %v866, 0.0
  %v869 = vmul.f32 %v865, 0.1
  %v870 = vmul.f32 %v866, 0.1
  %v871 = vsel %vm867, %v865, %v869
  %v872 = vsel %vm868, %v866, %v870
  %v873 = vsel %vm420, %v871, 0.0
  %v874 = vsel %vm420, %v872, 0.0
  %875 = vrot.lane.b32.xlu0 %v873, 17
  %v876 = vpop.permute.xlu0 %875
  %877 = vrot.lane.b32.xlu0 %v874, 17
  %v878 = vpop.permute.xlu0 %877
  %v879 = vsel %vm207, %v876, %v878
  %v880 = vsel %vm207, %v878, %v876
  %v881 = vmul.f32 %v880, %v76
  %v882 = vmul.f32 %v879, %v77
  %883 = vrot.lane.b32.xlu0 %v873, 16
  %v884 = vpop.permute.xlu0 %883
  %885 = vrot.lane.b32.xlu0 %v874, 16
  %v886 = vpop.permute.xlu0 %885
  %v887 = vsel %vm224, %v884, %v886
  %v888 = vsel %vm224, %v886, %v884
  %v889 = vmul.f32 %v888, %v56
  %v890 = vmul.f32 %v887, %v57
  %891 = vrot.lane.b32.xlu0 %v873, 15
  %v892 = vpop.permute.xlu0 %891
  %893 = vrot.lane.b32.xlu0 %v874, 15
  %v894 = vpop.permute.xlu0 %893
  %v895 = vsel %vm241, %v892, %v894
  %v896 = vsel %vm241, %v894, %v892
  %v897 = vmul.f32 %v896, %v78
  %v898 = vmul.f32 %v895, %v79
  %899 = vrot.lane.b32.xlu0 %v873, 1
  %v900 = vpop.permute.xlu0 %899
  %901 = vrot.lane.b32.xlu0 %v874, 1
  %v902 = vpop.permute.xlu0 %901
  %v903 = vsel %vm258, %v900, %v902
  %v904 = vsel %vm258, %v902, %v900
  %v905 = vmul.f32 %v904, %v68
  %v906 = vmul.f32 %v903, %v69
  %907 = vrot.lane.b32.xlu0 %v873, 127
  %v908 = vpop.permute.xlu0 %907
  %909 = vrot.lane.b32.xlu0 %v874, 127
  %v910 = vpop.permute.xlu0 %909
  %v911 = vsel %vm275, %v908, %v910
  %v912 = vsel %vm275, %v910, %v908
  %v913 = vmul.f32 %v911, %v74
  %v914 = vmul.f32 %v912, %v75
  %915 = vrot.lane.b32.xlu0 %v873, 113
  %v916 = vpop.permute.xlu0 %915
  %917 = vrot.lane.b32.xlu0 %v874, 113
  %v918 = vpop.permute.xlu0 %917
  %v919 = vsel %vm292, %v916, %v918
  %v920 = vsel %vm292, %v918, %v916
  %v921 = vmul.f32 %v919, %v80
  %v922 = vmul.f32 %v920, %v81
  %923 = vrot.lane.b32.xlu0 %v873, 112
  %v924 = vpop.permute.xlu0 %923
  %925 = vrot.lane.b32.xlu0 %v874, 112
  %v926 = vpop.permute.xlu0 %925
  %v927 = vsel %vm309, %v924, %v926
  %v928 = vsel %vm309, %v926, %v924
  %v929 = vmul.f32 %v927, %v62
  %v930 = vmul.f32 %v928, %v63
  %931 = vrot.lane.b32.xlu0 %v873, 111
  %v932 = vpop.permute.xlu0 %931
  %933 = vrot.lane.b32.xlu0 %v874, 111
  %v934 = vpop.permute.xlu0 %933
  %v935 = vsel %vm326, %v932, %v934
  %v936 = vsel %vm326, %v934, %v932
  %v937 = vmul.f32 %v935, %v82
  %v938 = vmul.f32 %v936, %v83
  %s939 = scalar_lea.vmem %s5, 4
  %v940 = vld [vmem:[%s939] sm:$0x3]
  %v941 = vpack.c.bf16 %v889, %v881
  %v942 = vpack.c.bf16 %v890, %v882
  %v943 = vpack.c.bf16 %v905, %v897
  %v944 = vpack.c.bf16 %v906, %v898
  %v945 = vpack.c.bf16 %v913, %v873
  %v946 = vpack.c.bf16 %v914, %v874
  %v947 = vpack.c.bf16 %v929, %v921
  %v948 = vpack.c.bf16 %v930, %v922
  %v949 = vpack.c.bf16 %v937, %v937
  %v950 = vpack.c.bf16 %v938, %v938
  %v952 = vsel %vm550, %v940, 0
  %v955 = vsel %vm420, %v949, 0
  %v958 = vsel %vm420, %v950, 0
  %960 = vmatprep.subr.bf16.mxu0 0
  %961 = vmatpush1.bf16.msra.mxu0 0
  %962 = vmatprep.subr.bf16.mxu0 0
  %963 = vmatpush1.bf16.msra.mxu0 0
  %964 = vmatprep.subr.bf16.mxu0 0
  %965 = vmatpush1.bf16.msra.mxu0 0
  %966 = vmatprep.subr.bf16.mxu0 %v958
  %967 = vmatpush1.bf16.msra.mxu0 %v955
  %968 = vmatprep.subr.bf16.mxu0 %v948
  %969 = vmatpush1.bf16.msra.mxu0 %v947
  %970 = vmatprep.subr.bf16.mxu0 %v946
  %971 = vmatpush1.bf16.msra.mxu0 %v945
  %972 = vmatprep.subr.bf16.mxu0 %v944
  %973 = vmatpush1.bf16.msra.mxu0 %v943
  %974 = vmatprep.subr.bf16.mxu0 %v942
  %975 = vmatpush1.bf16.msra.mxu0 %v941
  %976 = vmatprep.subr.bf16.mxu0 0
  %977 = vmatpush2.bf16.msra.mxu0 0
  %978 = vmatprep.subr.bf16.mxu0 0
  %979 = vmatpush2.bf16.msra.mxu0 0
  %980 = vmatprep.subr.bf16.mxu0 0
  %981 = vmatpush2.bf16.msra.mxu0 0
  %982 = vmatprep.subr.bf16.mxu0 0
  %983 = vmatpush2.bf16.msra.mxu0 0
  %984 = vmatprep.subr.bf16.mxu0 0
  %985 = vmatpush2.bf16.msra.mxu0 0
  %986 = vmatprep.subr.bf16.mxu0 0
  %987 = vmatpush2.bf16.msra.mxu0 0
  %988 = vmatprep.subr.bf16.mxu0 0
  %989 = vmatpush2.bf16.msra.mxu0 0
  %990 = vmatprep.subr.bf16.mxu0 0
  %991 = vmatpush2.bf16.msra.mxu0 0
  %992 = vmatprep.mubr.bf16.mxu0 0
  %993 = vmatmul.mubr.bf16.gmra.mxu0 %v952
  %v994 = vpop.f32.mrf.mxu0
  %v995 = vadd.f32 0.0, %v994
  %v996 = vpop.f32.mrf.mxu0
  %v997 = vadd.f32 0.0, %v996
  %v998 = vpop.f32.mrf.mxu0
  %v999 = vpop.f32.mrf.mxu0
  %1000 = vdwg.mxu0
  %v1003 = vrot.slane %v995, 4
  %v1004 = vrot.slane %v997, 4
  %v1007 = vadd.f32 %v406, %v1003
  %v1008 = vadd.f32 %v408, %v1004
  %s1009 = scalar_lea.vmem %s6, 6
  %v1010 = vld [vmem:[%s1009] sm:$0x3]
  %s1011 = scalar_lea.vmem %s7, 6
  %v1012 = vld [vmem:[%s1011] sm:$0x3]
  %v1013 = vmul.f32 %v1007, %v1007
  %v1014 = vmul.f32 %v1008, %v1008
  %v1017 = vrot.slane %v1007, 4
  %v1018 = vrot.slane %v1008, 4
  %v1021 = vsel %vm420, %v1017, %v1013
  %v1022 = vsel %vm420, %v1018, %v1014
  %v1023 = vadd.f32 %v1021, %v1022
  %1024 = vadd.xlane.f32.xlu0 %v1023
  %v1025 = vpop.xlane.xlu0 %1024
  %v1027 = vrot.slane %v1025, 2
  %v1029 = vadd.f32 %v1025, %v1027
  %v1030 = vmul.f32 %v1029, 0.001953125
  %v1031 = vmul.f32 %v1030, %v1030
  %v1033 = vrot.slane %v1031, 4
  %v1035 = vsub.f32 %v1030, %v1033
  %v1036 = vadd.f32 %v1035, 1e-05
  %v1037 = vrsqrt.pop %v1036
  %v1039 = vrot.slane %v1037, 4
  %v1041 = vmul.f32 %v1010, %v1039
  %v1042 = vmul.f32 %v1030, %v1041
  %v1043 = vsub.f32 %v1012, %v1042
  %v1045 = vrot.slane %v1041, 6
  %v1047 = vsel %vm447, %v1041, %v1045
  %1049 = vset.pattern.permute.xlu0 0
  %1050 = vperm.xlu0 %1049, %v1047
  %v1051 = vpop.permute.xlu0 %1050
  %v1052 = vrot.slane %v1051, 4
  %v1054 = vmul.f32 %v1007, %v1052
  %v1055 = vmul.f32 %v1008, %v1052
  %v1057 = vrot.slane %v1043, 6
  %v1059 = vsel %vm447, %v1043, %v1057
  %1061 = vset.pattern.permute.xlu0 0
  %1062 = vperm.xlu0 %1061, %v1059
  %v1063 = vpop.permute.xlu0 %1062
  %v1064 = vrot.slane %v1063, 4
  %v1066 = vadd.f32 %v1054, %v1064
  %v1067 = vadd.f32 %v1055, %v1064
  %vm1068 = vcmp.gt.f32.partialorder %v1066, 0.0
  %vm1069 = vcmp.gt.f32.partialorder %v1067, 0.0
  %v1070 = vmul.f32 %v1066, 0.1
  %v1071 = vmul.f32 %v1067, 0.1
  %v1072 = vsel %vm1068, %v1066, %v1070
  %v1073 = vsel %vm1069, %v1067, %v1071
  %v1074 = vsel %vm420, %v471, %v672
  %v1075 = vsel %vm420, %v472, %v673
  %v1076 = vsel %vm420, %v871, %v1072
  %v1077 = vsel %vm420, %v872, %v1073
  %v1078 = vld [vmem:[%s8] sm:$0xf]
  %v1079 = vld [vmem:[%s8 + $0x4] sm:$0xf]
  %v1080 = vpack.c.bf16 %v1076, %v1074
  %v1081 = vpack.c.bf16 %v1077, %v1075
  %v1084 = vunpack.c.l.b16 %v1078
  %v1085 = vunpack.c.l.b16 %v1079
  %v1086 = vpack.c.b16 %v1085, %v1084
  %v1088 = vsel %vm93, %v1086, 0
  %1090 = vmatprep.subr.bf16.mxu0 0
  %1091 = vmatpush1.bf16.msra.mxu0 0
  %1092 = vmatprep.subr.bf16.mxu0 0
  %1093 = vmatpush1.bf16.msra.mxu0 0
  %1094 = vmatprep.subr.bf16.mxu0 0
  %1095 = vmatpush1.bf16.msra.mxu0 0
  %1096 = vmatprep.subr.bf16.mxu0 0
  %1097 = vmatpush1.bf16.msra.mxu0 0
  %1098 = vmatprep.subr.bf16.mxu0 0
  %1099 = vmatpush1.bf16.msra.mxu0 0
  %1100 = vmatprep.subr.bf16.mxu0 0
  %1101 = vmatpush1.bf16.msra.mxu0 0
  %1102 = vmatprep.subr.bf16.mxu0 0
  %1103 = vmatpush1.bf16.msra.mxu0 0
  %1104 = vmatprep.subr.bf16.mxu0 %v1081
  %1105 = vmatpush1.bf16.msra.mxu0 %v1080
  %1106 = vmatprep.subr.bf16.mxu0 0
  %1107 = vmatpush2.bf16.msra.mxu0 0
  %1108 = vmatprep.subr.bf16.mxu0 0
  %1109 = vmatpush2.bf16.msra.mxu0 0
  %1110 = vmatprep.subr.bf16.mxu0 0
  %1111 = vmatpush2.bf16.msra.mxu0 0
  %1112 = vmatprep.subr.bf16.mxu0 0
  %1113 = vmatpush2.bf16.msra.mxu0 0
  %1114 = vmatprep.subr.bf16.mxu0 0
  %1115 = vmatpush2.bf16.msra.mxu0 0
  %1116 = vmatprep.subr.bf16.mxu0 0
  %1117 = vmatpush2.bf16.msra.mxu0 0
  %1118 = vmatprep.subr.bf16.mxu0 0
  %1119 = vmatpush2.bf16.msra.mxu0 0
  %1120 = vmatprep.subr.bf16.mxu0 0
  %1121 = vmatpush2.bf16.msra.mxu0 0
  %1122 = vmatprep.mubr.bf16.mxu0 0
  %1123 = vmatmul.mubr.bf16.gmra.mxu0 %v1088
  %v1124 = vpop.f32.mrf.mxu0
  %v1125 = vadd.f32 0.0, %v1124
  %v1126 = vpop.f32.mrf.mxu0
  %v1127 = vadd.f32 0.0, %v1126
  %v1128 = vpop.f32.mrf.mxu0
  %v1129 = vadd.f32 0.0, %v1128
  %v1130 = vpop.f32.mrf.mxu0
  %v1131 = vadd.f32 0.0, %v1130
  %1132 = vdwg.mxu0
  %v1133 = vld [vmem:[%s9] sm:$0xff]
  %v1134 = vld [vmem:[%s10] sm:$0xff]
  %v1135 = vmul.f32 %v1125, %v1125
  %v1136 = vmul.f32 %v1127, %v1127
  %v1137 = vmul.f32 %v1129, %v1129
  %v1138 = vmul.f32 %v1131, %v1131
  %v1139 = vadd.f32 %v1125, %v1127
  %1140 = vadd.xlane.f32.xlu0 %v1139
  %v1141 = vpop.xlane.xlu0 %1140
  %v1142 = vadd.f32 %v1129, %v1131
  %1143 = vadd.xlane.f32.xlu0 %v1142
  %v1144 = vpop.xlane.xlu0 %1143
  %v1145 = vadd.f32 %v1135, %v1136
  %1146 = vadd.xlane.f32.xlu0 %v1145
  %v1147 = vpop.xlane.xlu0 %1146
  %v1148 = vadd.f32 %v1137, %v1138
  %1149 = vadd.xlane.f32.xlu0 %v1148
  %v1150 = vpop.xlane.xlu0 %1149
  %v1151 = vadd.f32 %v1141, %v1144
  %v1152 = vadd.f32 %v1147, %v1150
  %v1153 = vmul.f32 %v1151, 0.001953125
  %v1154 = vmul.f32 %v1152, 0.001953125
  %v1155 = vmul.f32 %v1153, %v1153
  %v1156 = vsub.f32 %v1154, %v1155
  %v1157 = vadd.f32 %v1156, 1e-05
  %v1158 = vrsqrt.pop %v1157
  %v1159 = vmul.f32 %v1133, %v1158
  %v1160 = vmul.f32 %v1153, %v1159
  %v1161 = vsub.f32 %v1134, %v1160
  %1163 = vset.pattern.permute.xlu0 0
  %1164 = vperm.xlu0 %1163, %v1159
  %v1165 = vpop.permute.xlu0 %1164
  %v1167 = vmul.f32 %v1125, %v1165
  %v1168 = vmul.f32 %v1127, %v1165
  %v1169 = vmul.f32 %v1129, %v1165
  %v1170 = vmul.f32 %v1131, %v1165
  %1172 = vset.pattern.permute.xlu0 0
  %1173 = vperm.xlu0 %1172, %v1161
  %v1174 = vpop.permute.xlu0 %1173
  %v1176 = vadd.f32 %v1167, %v1174
  %v1177 = vadd.f32 %v1168, %v1174
  %v1178 = vadd.f32 %v1169, %v1174
  %v1179 = vadd.f32 %v1170, %v1174
  %v1180 = vadd.f32 %v1176, %v39
  %v1181 = vadd.f32 %v1177, %v40
  %v1182 = vadd.f32 %v1178, %v41
  %v1183 = vadd.f32 %v1179, %v42
  %vm1184 = vcmp.gt.f32.partialorder %v1180, 0.0
  %vm1185 = vcmp.gt.f32.partialorder %v1181, 0.0
  %vm1186 = vcmp.gt.f32.partialorder %v1182, 0.0
  %vm1187 = vcmp.gt.f32.partialorder %v1183, 0.0
  %v1188 = vmul.f32 %v1180, 0.1
  %v1189 = vmul.f32 %v1181, 0.1
  %v1190 = vmul.f32 %v1182, 0.1
  %v1191 = vmul.f32 %v1183, 0.1
  %v1192 = vsel %vm1184, %v1180, %v1188
  %v1193 = vsel %vm1185, %v1181, %v1189
  %v1194 = vsel %vm1186, %v1182, %v1190
  %v1195 = vsel %vm1187, %v1183, %v1191
  %1196 = vst [vmem:[%s11] sm:$0xff] %v1192
  %1197 = vst [vmem:[%s11 + $0x8] sm:$0xff] %v1193
  %1198 = vst [vmem:[%s11 + $0x10] sm:$0xff] %v1194
  %1199 = vst [vmem:[%s11 + $0x18] sm:$0xff] %v1195
  // Predicated region
  $region46: #{res2pcs_forward.1} parent=0 // pred_check
    _
  $region47: #{res2pcs_forward.1} parent=0 // pred_check_branch
    %1201 = sbr.rel (0) target = $region49
  $region48: #{res2pcs_forward.1} parent=0 // pred_region
    _
  $region49: #{res2pcs_forward.1} parent=0 // pred_fallthru
    _
  // Predicated region
  $region50: #{res2pcs_forward.1} parent=0 // pred_check
    _
  $region51: #{res2pcs_forward.1} parent=0 // pred_check_branch
    %1203 = sbr.rel (0) target = $region53
  $region52: #{res2pcs_forward.1} parent=0 // pred_region
    _
  $region53: #{res2pcs_forward.1} parent=0 // pred_fallthru
    _

</llo_original>
